<compile_context>
chip_gen: v7x
topology: tpu7x:2x2x1
jax: 0.10.0
libtpu: 0.0.40
codegen_flags: <defaults>
</compile_context>

<pallas_src>
import functools

import jax
import jax.numpy as jnp
from jax.experimental import pallas as pl
from jax.experimental.pallas import tpu as pltpu


def _sigmoid(x):
    # Explicit formula (exp on EUP + divide) — used identically in kernel & ref.
    return 1.0 / (1.0 + jnp.exp(-x))


def _lstm_kernel(x_ref, w1_ref, b1_ref, lng_ref, lnb_ref,
                 wih_ref, whh_ref, bl_ref,
                 w2_ref, b2_ref, w3_ref,
                 out_ref, gx_ref, hbuf_ref,
                 *, seq_len, batch_chunk, hidden, unroll_time):
    T, BC, H = seq_len, batch_chunk, hidden

    # ---------- batched prologue (all timesteps of this batch chunk) ----------
    # fc_1 + ReLU  (bf16 operands, f32 MXU accumulation)
    xb = x_ref[...]                                                   # (T*BC, F) bf16
    e = jnp.dot(xb, w1_ref[...], preferred_element_type=jnp.float32) + b1_ref[...]
    e = jnp.maximum(e, 0.0)

    # LayerNorm over n_embd (eps = 1e-5, elementwise affine) — f32 VPU/EUP math.
    mu = jnp.mean(e, axis=-1, keepdims=True)
    var = jnp.mean(jnp.square(e - mu), axis=-1, keepdims=True)
    e = (e - mu) * jax.lax.rsqrt(var + 1e-5)
    e = e * lng_ref[...] + lnb_ref[...]
    # dropout_1: identity (inference)

    # LSTM input projection for ALL timesteps; combined bias folded in once.
    gx_ref[...] = jnp.dot(e.astype(jnp.bfloat16), wih_ref[...],
                          preferred_element_type=jnp.float32) + bl_ref[...]

    # ---------- recurrence: only h @ W_hh + elementwise gate math per step ----
    whh = whh_ref[...]                                                # (H, 4H) f32

    def step(row, h, c):
        g = gx_ref[pl.ds(row, BC), :] + jnp.dot(
            h, whh, preferred_element_type=jnp.float32)               # (BC, 4H)
        # One full-width sigmoid pass + one full-width tanh pass (4H lanes),
        # then lane-slice the i/f/g/o quarters (PyTorch gate order).
        sg = _sigmoid(g)
        tg = jnp.tanh(g)
        i_g = sg[:, 0 * H:1 * H]
        f_g = sg[:, 1 * H:2 * H]
        o_g = sg[:, 3 * H:4 * H]
        g_g = tg[:, 2 * H:3 * H]
        c = f_g * c + i_g * g_g
        h = o_g * jnp.tanh(c)
        hbuf_ref[pl.ds(row, BC), :] = h       # buffer h_t for the batched epilogue
        return h, c

    h0 = jnp.zeros((BC, H), jnp.float32)
    c0 = jnp.zeros((BC, H), jnp.float32)
    if T <= unroll_time:
        # Short sequence: fully static unroll (best LLO scheduler visibility).
        h, c = h0, c0
        for t in range(T):
            h, c = step(t * BC, h, c)
    else:
        # Long sequence: bounded instruction count / vreg live ranges.
        def body(t, carry):
            h, c = carry
            return step(pl.multiple_of(t * BC, BC), h, c)
        h, c = jax.lax.fori_loop(0, T, body, (h0, c0))

    # ---------- batched epilogue: dropout_2 (identity), fc_2 + ReLU, linear ---
    hall = hbuf_ref[...].astype(jnp.bfloat16)                         # (T*BC, H)
    y = jnp.dot(hall, w2_ref[...], preferred_element_type=jnp.float32) + b2_ref[...]
    y = jnp.maximum(y, 0.0)                                           # (T*BC, E)

    # Final E->1 projection emitted lane-dense: (1,E) contracted with (T*BC,E)
    # along E gives one (1, T*BC) row — a single lane-major store, no masked
    # single-lane writes.  (b3 is added in the wrapper.)
    out_row = jax.lax.dot_general(
        w3_ref[...], y, (((1,), (1,)), ((), ())),
        preferred_element_type=jnp.float32)                           # (1, T*BC)
    out_ref[...] = out_row.astype(out_ref.dtype)


def shallow_regression_lstm(x, params, *, batch_chunk=8, unroll_time=16):
    """Forward pass of ShallowRegressionLSTM. x: (B, T, F) f32 -> (B, T, 1) f32."""
    B, T, F = x.shape
    E = params["w1"].shape[1]
    H = params["whh"].shape[0]
    BC = batch_chunk
    assert BC % 8 == 0, "batch chunk must be a sublane multiple"
    Bp = ((B + BC - 1) // BC) * BC
    NC = Bp // BC                                    # grid size (parallel on v7x)

    # Pad batch, then lay out chunk-major & time-major within a chunk:
    # row index inside a chunk = t*BC + b_local.  Cast inputs / big weights to
    # bf16 for the MXU (f32 accumulation inside the kernel).
    x_pad = jnp.zeros((Bp, T, F), jnp.float32).at[:B].set(x.astype(jnp.float32))
    x_cm = (x_pad.reshape(NC, BC, T, F)
                 .transpose(0, 2, 1, 3)
                 .reshape(NC, T * BC, F)
                 .astype(jnp.bfloat16))
    w1 = params["w1"].astype(jnp.bfloat16)
    wih = params["wih"].astype(jnp.bfloat16)
    w2 = params["w2"].astype(jnp.bfloat16)
    w3row = params["w3"].reshape(1, E).astype(jnp.float32)     # (E,1) -> (1,E)

    def rep(shape):            # weight replicated across the chunk grid
        return pl.BlockSpec(shape, lambda c: (0, 0))

    in_specs = [
        pl.BlockSpec((None, T * BC, F), lambda c: (c, 0, 0)),   # x chunk (bf16)
        rep((F, E)),            # w1 (bf16)
        rep((1, E)),            # b1
        rep((1, E)),            # ln gamma
        rep((1, E)),            # ln beta
        rep((E, 4 * H)),        # w_ih (bf16), gate order i,f,g,o
        rep((H, 4 * H)),        # w_hh (f32, recurrence)
        rep((1, 4 * H)),        # b_ih + b_hh
        rep((H, E)),            # w2 (bf16)
        rep((1, E)),            # b2
        rep((1, E)),            # w3 as a row (f32)
    ]
    out_spec = pl.BlockSpec((None, 1, T * BC), lambda c: (c, 0, 0))

    grid_spec = pltpu.PrefetchScalarGridSpec(
        num_scalar_prefetch=0,
        grid=(NC,),
        in_specs=in_specs,
        out_specs=out_spec,
        scratch_shapes=[
            pltpu.VMEM((T * BC, 4 * H), jnp.float32),   # gx: input projection
            pltpu.VMEM((T * BC, H), jnp.float32),       # h history
        ],
    )

    kernel = functools.partial(_lstm_kernel, seq_len=T, batch_chunk=BC,
                               hidden=H, unroll_time=unroll_time)
    out_rows = pl.pallas_call(
        kernel,
        out_shape=jax.ShapeDtypeStruct((NC, 1, T * BC), jnp.float32),
        grid_spec=grid_spec,
        compiler_params=pltpu.CompilerParams(
            dimension_semantics=("parallel",)),         # batch chunks: v7x 2-TC
    )(x_cm, w1, params["b1"], params["lng"], params["lnb"],
      wih, params["whh"], params["bl"], w2, params["b2"], w3row)

    # (NC, 1, T*BC) -> (B, T, 1); chunk row index = t*BC + b_local.
    out = out_rows.reshape(NC, T, BC).transpose(0, 2, 1).reshape(Bp, T)
    out = out[:B, :, None] + params["b3"].reshape(())   # b3 added here (scalar)
    return out


def _ref_forward(x, p):
    """Pure-JAX reference of the PyTorch forward (dropout = identity), using the
    same mixed-precision policy as the kernel: bf16 MXU operands for the three
    batched matmuls, f32 everywhere else (LayerNorm, gates, recurrence)."""
    f32, bf16 = jnp.float32, jnp.bfloat16

    def mm(a, b):   # bf16-safe matmul with f32 accumulation
        y = jnp.dot(a.reshape(-1, a.shape[-1]), b, preferred_element_type=f32)
        return y.reshape(*a.shape[:-1], b.shape[-1])

    e = jnp.maximum(mm(x.astype(bf16), p["w1"].astype(bf16)) + p["b1"], 0.0)
    mu = e.mean(-1, keepdims=True)
    var = ((e - mu) ** 2).mean(-1, keepdims=True)
    e = (e - mu) / jnp.sqrt(var + 1e-5) * p["lng"] + p["lnb"]

    B, T, _ = e.shape
    H = p["whh"].shape[0]
    gx = mm(e.astype(bf16), p["wih"].astype(bf16)) + p["bl"]   # (B, T, 4H)

    h = jnp.zeros((B, H), f32)
    c = jnp.zeros((B, H), f32)
    hs = []
    for t in range(T):
        gates = gx[:, t] + h @ p["whh"]
        i = _sigmoid(gates[:, :H])
        f = _sigmoid(gates[:, H:2 * H])
        g = jnp.tanh(gates[:, 2 * H:3 * H])
        o = _sigmoid(gates[:, 3 * H:])
        c = f * c + i * g
        h = o * jnp.tanh(c)
        hs.append(h)
    hall = jnp.stack(hs, axis=1)                               # (B, T, H)

    y = jnp.maximum(mm(hall.astype(bf16), p["w2"].astype(bf16)) + p["b2"], 0.0)
    return mm(y, p["w3"]) + p["b3"]


def _init_params(key, num_features, n_embd, hidden_units):
    ks = jax.random.split(key, 12)
    s = 0.1
    return {
        "w1": s * jax.random.normal(ks[0], (num_features, n_embd), jnp.float32),
        "b1": s * jax.random.normal(ks[1], (1, n_embd), jnp.float32),
        "lng": 1.0 + s * jax.random.normal(ks[2], (1, n_embd), jnp.float32),
        "lnb": s * jax.random.normal(ks[3], (1, n_embd), jnp.float32),
        # NOTE: PyTorch stores weight_ih/weight_hh as (4H, in); these are the
        # pre-transposed (in, 4H) equivalents with the same i,f,g,o gate order.
        "wih": s * jax.random.normal(ks[4], (n_embd, 4 * hidden_units), jnp.float32),
        "whh": s * jax.random.normal(ks[5], (hidden_units, 4 * hidden_units), jnp.float32),
        "bl": s * jax.random.normal(ks[6], (1, 4 * hidden_units), jnp.float32),
        "w2": s * jax.random.normal(ks[7], (hidden_units, n_embd), jnp.float32),
        "b2": s * jax.random.normal(ks[8], (1, n_embd), jnp.float32),
        "w3": s * jax.random.normal(ks[9], (n_embd, 1), jnp.float32),
        "b3": s * jax.random.normal(ks[10], (1, 1), jnp.float32),
    }


if __name__ == "__main__":
    B, T = 4, 8                 # batch, sequence length
    NUM_FEATURES = 8
    N_EMBD = 32
    HIDDEN = 32

    key = jax.random.PRNGKey(0)
    k_x, k_p = jax.random.split(key)
    x = jax.random.normal(k_x, (B, T, NUM_FEATURES), jnp.float32)
    params = _init_params(k_p, NUM_FEATURES, N_EMBD, HIDDEN)

    out = shallow_regression_lstm(x, params)
    out = jax.block_until_ready(out)

    ref = _ref_forward(x, params)
    assert out.shape == (B, T, 1)
    # Tolerance accounts for bf16 MXU operands (mirrored in the reference) and
    # minor transcendental/accumulation-order differences.
    assert jnp.allclose(out, ref, atol=2e-3, rtol=2e-3), "mismatch vs reference"

    print("KERNEL_OK")
</pallas_src>

<mosaic_0001>
module attributes {stable_mosaic.version = 11 : i64} {
  func.func @_lstm_kernel(%arg0: i32, %arg1: memref<1x64x8xbf16, #tpu.memory_space<vmem>>, %arg2: memref<8x32xbf16, #tpu.memory_space<vmem>>, %arg3: memref<1x32xf32, #tpu.memory_space<vmem>>, %arg4: memref<1x32xf32, #tpu.memory_space<vmem>>, %arg5: memref<1x32xf32, #tpu.memory_space<vmem>>, %arg6: memref<32x128xbf16, #tpu.memory_space<vmem>>, %arg7: memref<32x128xf32, #tpu.memory_space<vmem>>, %arg8: memref<1x128xf32, #tpu.memory_space<vmem>>, %arg9: memref<32x32xbf16, #tpu.memory_space<vmem>>, %arg10: memref<1x32xf32, #tpu.memory_space<vmem>>, %arg11: memref<1x32xf32, #tpu.memory_space<vmem>>, %arg12: memref<1x1x64xf32, #tpu.memory_space<vmem>>, %arg13: memref<64x128xf32, #tpu.memory_space<vmem>>, %arg14: memref<64x32xf32, #tpu.memory_space<vmem>>) attributes {dimension_semantics = [#tpu.dimension_semantics<parallel>], iteration_bounds = array<i64: 1>, scalar_prefetch = 0 : i64, scratch_operands = 2 : i64, tpu.core_type = #tpu.core_type<tc>, window_params = [{transform_indices = @transform_0, window_bounds = array<i64: 1, 64, 8>}, {pipeline_mode = #tpu.pipeline_mode<synchronous>, transform_indices = @transform_1, window_bounds = array<i64: 8, 32>}, {pipeline_mode = #tpu.pipeline_mode<synchronous>, transform_indices = @transform_2, window_bounds = array<i64: 1, 32>}, {pipeline_mode = #tpu.pipeline_mode<synchronous>, transform_indices = @transform_3, window_bounds = array<i64: 1, 32>}, {pipeline_mode = #tpu.pipeline_mode<synchronous>, transform_indices = @transform_4, window_bounds = array<i64: 1, 32>}, {pipeline_mode = #tpu.pipeline_mode<synchronous>, transform_indices = @transform_5, window_bounds = array<i64: 32, 128>}, {pipeline_mode = #tpu.pipeline_mode<synchronous>, transform_indices = @transform_6, window_bounds = array<i64: 32, 128>}, {pipeline_mode = #tpu.pipeline_mode<synchronous>, transform_indices = @transform_7, window_bounds = array<i64: 1, 128>}, {pipeline_mode = #tpu.pipeline_mode<synchronous>, transform_indices = @transform_8, window_bounds = array<i64: 32, 32>}, {pipeline_mode = #tpu.pipeline_mode<synchronous>, transform_indices = @transform_9, window_bounds = array<i64: 1, 32>}, {pipeline_mode = #tpu.pipeline_mode<synchronous>, transform_indices = @transform_10, window_bounds = array<i64: 1, 32>}, {transform_indices = @transform_11, window_bounds = array<i64: 1, 1, 64>}]} {
    %c0 = arith.constant 0 : index
    %c0_0 = arith.constant 0 : index
    %c0_1 = arith.constant 0 : index
    %0 = vector.load %arg1[%c0, %c0_0, %c0_1] : memref<1x64x8xbf16, #tpu.memory_space<vmem>>, vector<1x64x8xbf16>
    %1 = vector.shape_cast %0 : vector<1x64x8xbf16> to vector<64x8xbf16>
    %c0_2 = arith.constant 0 : index
    %c0_3 = arith.constant 0 : index
    %2 = vector.load %arg2[%c0_2, %c0_3] : memref<8x32xbf16, #tpu.memory_space<vmem>>, vector<8x32xbf16>
    %cst = arith.constant dense<0.000000e+00> : vector<64x32xf32>
    %3 = tpu.matmul %1, %2, %cst {dimension_numbers = #tpu.dot_dimension_numbers<[1], [0], [0], [1], [0, 0, 1, 1], [], []>} : vector<64x8xbf16>, vector<8x32xbf16>, vector<64x32xf32> -> vector<64x32xf32>
    %c0_4 = arith.constant 0 : index
    %c0_5 = arith.constant 0 : index
    %4 = vector.load %arg3[%c0_4, %c0_5] : memref<1x32xf32, #tpu.memory_space<vmem>>, vector<1x32xf32>
    %5 = vector.broadcast %4 : vector<1x32xf32> to vector<64x32xf32>
    %6 = arith.addf %3, %5 : vector<64x32xf32>
    %cst_6 = arith.constant 0.000000e+00 : f32
    %7 = vector.broadcast %cst_6 : f32 to vector<64x32xf32>
    %8 = arith.maximumf %6, %7 : vector<64x32xf32>
    %cst_7 = arith.constant dense<0.000000e+00> : vector<64xf32>
    %9 = vector.multi_reduction <add>, %8, %cst_7 [1] : vector<64x32xf32> to vector<64xf32>
    %10 = vector.shape_cast %9 : vector<64xf32> to vector<64x1xf32>
    %cst_8 = arith.constant 3.200000e+01 : f32
    %11 = vector.broadcast %cst_8 : f32 to vector<64x1xf32>
    %12 = arith.divf %10, %11 : vector<64x1xf32>
    %13 = vector.broadcast %12 : vector<64x1xf32> to vector<64x32xf32>
    %14 = arith.subf %8, %13 : vector<64x32xf32>
    %15 = arith.mulf %14, %14 : vector<64x32xf32>
    %cst_9 = arith.constant dense<0.000000e+00> : vector<64xf32>
    %16 = vector.multi_reduction <add>, %15, %cst_9 [1] : vector<64x32xf32> to vector<64xf32>
    %17 = vector.shape_cast %16 : vector<64xf32> to vector<64x1xf32>
    %cst_10 = arith.constant 3.200000e+01 : f32
    %18 = vector.broadcast %cst_10 : f32 to vector<64x1xf32>
    %19 = arith.divf %17, %18 : vector<64x1xf32>
    %20 = vector.broadcast %12 : vector<64x1xf32> to vector<64x32xf32>
    %21 = arith.subf %8, %20 : vector<64x32xf32>
    %cst_11 = arith.constant 9.99999974E-6 : f32
    %22 = vector.broadcast %cst_11 : f32 to vector<64x1xf32>
    %23 = arith.addf %19, %22 : vector<64x1xf32>
    %24 = math.rsqrt %23 : vector<64x1xf32>
    %25 = vector.broadcast %24 : vector<64x1xf32> to vector<64x32xf32>
    %26 = arith.mulf %21, %25 : vector<64x32xf32>
    %c0_12 = arith.constant 0 : index
    %c0_13 = arith.constant 0 : index
    %27 = vector.load %arg4[%c0_12, %c0_13] : memref<1x32xf32, #tpu.memory_space<vmem>>, vector<1x32xf32>
    %28 = vector.broadcast %27 : vector<1x32xf32> to vector<64x32xf32>
    %29 = arith.mulf %26, %28 : vector<64x32xf32>
    %c0_14 = arith.constant 0 : index
    %c0_15 = arith.constant 0 : index
    %30 = vector.load %arg5[%c0_14, %c0_15] : memref<1x32xf32, #tpu.memory_space<vmem>>, vector<1x32xf32>
    %31 = vector.broadcast %30 : vector<1x32xf32> to vector<64x32xf32>
    %32 = arith.addf %29, %31 : vector<64x32xf32>
    %33 = arith.truncf %32 : vector<64x32xf32> to vector<64x32xbf16>
    %c0_16 = arith.constant 0 : index
    %c0_17 = arith.constant 0 : index
    %34 = vector.load %arg6[%c0_16, %c0_17] : memref<32x128xbf16, #tpu.memory_space<vmem>>, vector<32x128xbf16>
    %cst_18 = arith.constant dense<0.000000e+00> : vector<64x128xf32>
    %35 = tpu.matmul %33, %34, %cst_18 {dimension_numbers = #tpu.dot_dimension_numbers<[1], [0], [0], [1], [0, 0, 1, 1], [], []>} : vector<64x32xbf16>, vector<32x128xbf16>, vector<64x128xf32> -> vector<64x128xf32>
    %c0_19 = arith.constant 0 : index
    %c0_20 = arith.constant 0 : index
    %36 = vector.load %arg8[%c0_19, %c0_20] : memref<1x128xf32, #tpu.memory_space<vmem>>, vector<1x128xf32>
    %37 = vector.broadcast %36 : vector<1x128xf32> to vector<64x128xf32>
    %38 = arith.addf %35, %37 : vector<64x128xf32>
    %c0_21 = arith.constant 0 : index
    %c0_22 = arith.constant 0 : index
    %39 = vector.load %arg13[%c0_21, %c0_22] : memref<64x128xf32, #tpu.memory_space<vmem>>, vector<64x128xf32>
    tpu.vector_store %arg13[%c0_21, %c0_22], %38 {strides = array<i32>} : memref<64x128xf32, #tpu.memory_space<vmem>>, vector<64x128xf32>,
    %c0_23 = arith.constant 0 : index
    %c0_24 = arith.constant 0 : index
    %40 = vector.load %arg7[%c0_23, %c0_24] : memref<32x128xf32, #tpu.memory_space<vmem>>, vector<32x128xf32>
    %cst_25 = arith.constant 0.000000e+00 : f32
    %41 = vector.broadcast %cst_25 : f32 to vector<8x32xf32>
    %cst_26 = arith.constant 0.000000e+00 : f32
    %42 = vector.broadcast %cst_26 : f32 to vector<8x32xf32>
    %c0_27 = arith.constant 0 : index
    %c0_28 = arith.constant 0 : index
    %43 = vector.load %arg13[%c0_27, %c0_28] : memref<64x128xf32, #tpu.memory_space<vmem>>, vector<8x128xf32>
    %cst_29 = arith.constant dense<0.000000e+00> : vector<8x128xf32>
    %44 = tpu.matmul %41, %40, %cst_29 {dimension_numbers = #tpu.dot_dimension_numbers<[1], [0], [0], [1], [0, 0, 1, 1], [], []>} : vector<8x32xf32>, vector<32x128xf32>, vector<8x128xf32> -> vector<8x128xf32>
    %45 = arith.addf %43, %44 : vector<8x128xf32>
    %cst_30 = arith.constant 0.000000e+00 : f32
    %46 = vector.broadcast %cst_30 : f32 to vector<8x128xf32>
    %47 = arith.subf %46, %45 : vector<8x128xf32>
    %48 = math.exp %47 : vector<8x128xf32>
    %cst_31 = arith.constant 1.000000e+00 : f32
    %49 = vector.broadcast %cst_31 : f32 to vector<8x128xf32>
    %50 = arith.addf %49, %48 : vector<8x128xf32>
    %cst_32 = arith.constant 1.000000e+00 : f32
    %51 = vector.broadcast %cst_32 : f32 to vector<8x128xf32>
    %52 = arith.divf %51, %50 : vector<8x128xf32>
    %53 = math.tanh %45 : vector<8x128xf32>
    %54 = vector.extract_strided_slice %52 {offsets = [0, 0], sizes = [8, 32], strides = [1, 1]} : vector<8x128xf32> to vector<8x32xf32>
    %55 = vector.extract_strided_slice %52 {offsets = [0, 32], sizes = [8, 32], strides = [1, 1]} : vector<8x128xf32> to vector<8x32xf32>
    %56 = vector.extract_strided_slice %52 {offsets = [0, 96], sizes = [8, 32], strides = [1, 1]} : vector<8x128xf32> to vector<8x32xf32>
    %57 = vector.extract_strided_slice %53 {offsets = [0, 64], sizes = [8, 32], strides = [1, 1]} : vector<8x128xf32> to vector<8x32xf32>
    %58 = arith.mulf %55, %42 : vector<8x32xf32>
    %59 = arith.mulf %54, %57 : vector<8x32xf32>
    %60 = arith.addf %58, %59 : vector<8x32xf32>
    %61 = math.tanh %60 : vector<8x32xf32>
    %62 = arith.mulf %56, %61 : vector<8x32xf32>
    %c0_33 = arith.constant 0 : index
    %c0_34 = arith.constant 0 : index
    %63 = vector.load %arg14[%c0_33, %c0_34] : memref<64x32xf32, #tpu.memory_space<vmem>>, vector<8x32xf32>
    tpu.vector_store %arg14[%c0_33, %c0_34], %62 {strides = array<i32>} : memref<64x32xf32, #tpu.memory_space<vmem>>, vector<8x32xf32>,
    %c8 = arith.constant 8 : index
    %c0_35 = arith.constant 0 : index
    %64 = vector.load %arg13[%c8, %c0_35] : memref<64x128xf32, #tpu.memory_space<vmem>>, vector<8x128xf32>
    %cst_36 = arith.constant dense<0.000000e+00> : vector<8x128xf32>
    %65 = tpu.matmul %62, %40, %cst_36 {dimension_numbers = #tpu.dot_dimension_numbers<[1], [0], [0], [1], [0, 0, 1, 1], [], []>} : vector<8x32xf32>, vector<32x128xf32>, vector<8x128xf32> -> vector<8x128xf32>
    %66 = arith.addf %64, %65 : vector<8x128xf32>
    %cst_37 = arith.constant 0.000000e+00 : f32
    %67 = vector.broadcast %cst_37 : f32 to vector<8x128xf32>
    %68 = arith.subf %67, %66 : vector<8x128xf32>
    %69 = math.exp %68 : vector<8x128xf32>
    %cst_38 = arith.constant 1.000000e+00 : f32
    %70 = vector.broadcast %cst_38 : f32 to vector<8x128xf32>
    %71 = arith.addf %70, %69 : vector<8x128xf32>
    %cst_39 = arith.constant 1.000000e+00 : f32
    %72 = vector.broadcast %cst_39 : f32 to vector<8x128xf32>
    %73 = arith.divf %72, %71 : vector<8x128xf32>
    %74 = math.tanh %66 : vector<8x128xf32>
    %75 = vector.extract_strided_slice %73 {offsets = [0, 0], sizes = [8, 32], strides = [1, 1]} : vector<8x128xf32> to vector<8x32xf32>
    %76 = vector.extract_strided_slice %73 {offsets = [0, 32], sizes = [8, 32], strides = [1, 1]} : vector<8x128xf32> to vector<8x32xf32>
    %77 = vector.extract_strided_slice %73 {offsets = [0, 96], sizes = [8, 32], strides = [1, 1]} : vector<8x128xf32> to vector<8x32xf32>
    %78 = vector.extract_strided_slice %74 {offsets = [0, 64], sizes = [8, 32], strides = [1, 1]} : vector<8x128xf32> to vector<8x32xf32>
    %79 = arith.mulf %76, %60 : vector<8x32xf32>
    %80 = arith.mulf %75, %78 : vector<8x32xf32>
    %81 = arith.addf %79, %80 : vector<8x32xf32>
    %82 = math.tanh %81 : vector<8x32xf32>
    %83 = arith.mulf %77, %82 : vector<8x32xf32>
    %c8_40 = arith.constant 8 : index
    %c0_41 = arith.constant 0 : index
    %84 = vector.load %arg14[%c8_40, %c0_41] : memref<64x32xf32, #tpu.memory_space<vmem>>, vector<8x32xf32>
    tpu.vector_store %arg14[%c8_40, %c0_41], %83 {strides = array<i32>} : memref<64x32xf32, #tpu.memory_space<vmem>>, vector<8x32xf32>,
    %c16 = arith.constant 16 : index
    %c0_42 = arith.constant 0 : index
    %85 = vector.load %arg13[%c16, %c0_42] : memref<64x128xf32, #tpu.memory_space<vmem>>, vector<8x128xf32>
    %cst_43 = arith.constant dense<0.000000e+00> : vector<8x128xf32>
    %86 = tpu.matmul %83, %40, %cst_43 {dimension_numbers = #tpu.dot_dimension_numbers<[1], [0], [0], [1], [0, 0, 1, 1], [], []>} : vector<8x32xf32>, vector<32x128xf32>, vector<8x128xf32> -> vector<8x128xf32>
    %87 = arith.addf %85, %86 : vector<8x128xf32>
    %cst_44 = arith.constant 0.000000e+00 : f32
    %88 = vector.broadcast %cst_44 : f32 to vector<8x128xf32>
    %89 = arith.subf %88, %87 : vector<8x128xf32>
    %90 = math.exp %89 : vector<8x128xf32>
    %cst_45 = arith.constant 1.000000e+00 : f32
    %91 = vector.broadcast %cst_45 : f32 to vector<8x128xf32>
    %92 = arith.addf %91, %90 : vector<8x128xf32>
    %cst_46 = arith.constant 1.000000e+00 : f32
    %93 = vector.broadcast %cst_46 : f32 to vector<8x128xf32>
    %94 = arith.divf %93, %92 : vector<8x128xf32>
    %95 = math.tanh %87 : vector<8x128xf32>
    %96 = vector.extract_strided_slice %94 {offsets = [0, 0], sizes = [8, 32], strides = [1, 1]} : vector<8x128xf32> to vector<8x32xf32>
    %97 = vector.extract_strided_slice %94 {offsets = [0, 32], sizes = [8, 32], strides = [1, 1]} : vector<8x128xf32> to vector<8x32xf32>
    %98 = vector.extract_strided_slice %94 {offsets = [0, 96], sizes = [8, 32], strides = [1, 1]} : vector<8x128xf32> to vector<8x32xf32>
    %99 = vector.extract_strided_slice %95 {offsets = [0, 64], sizes = [8, 32], strides = [1, 1]} : vector<8x128xf32> to vector<8x32xf32>
    %100 = arith.mulf %97, %81 : vector<8x32xf32>
    %101 = arith.mulf %96, %99 : vector<8x32xf32>
    %102 = arith.addf %100, %101 : vector<8x32xf32>
    %103 = math.tanh %102 : vector<8x32xf32>
    %104 = arith.mulf %98, %103 : vector<8x32xf32>
    %c16_47 = arith.constant 16 : index
    %c0_48 = arith.constant 0 : index
    %105 = vector.load %arg14[%c16_47, %c0_48] : memref<64x32xf32, #tpu.memory_space<vmem>>, vector<8x32xf32>
    tpu.vector_store %arg14[%c16_47, %c0_48], %104 {strides = array<i32>} : memref<64x32xf32, #tpu.memory_space<vmem>>, vector<8x32xf32>,
    %c24 = arith.constant 24 : index
    %c0_49 = arith.constant 0 : index
    %106 = vector.load %arg13[%c24, %c0_49] : memref<64x128xf32, #tpu.memory_space<vmem>>, vector<8x128xf32>
    %cst_50 = arith.constant dense<0.000000e+00> : vector<8x128xf32>
    %107 = tpu.matmul %104, %40, %cst_50 {dimension_numbers = #tpu.dot_dimension_numbers<[1], [0], [0], [1], [0, 0, 1, 1], [], []>} : vector<8x32xf32>, vector<32x128xf32>, vector<8x128xf32> -> vector<8x128xf32>
    %108 = arith.addf %106, %107 : vector<8x128xf32>
    %cst_51 = arith.constant 0.000000e+00 : f32
    %109 = vector.broadcast %cst_51 : f32 to vector<8x128xf32>
    %110 = arith.subf %109, %108 : vector<8x128xf32>
    %111 = math.exp %110 : vector<8x128xf32>
    %cst_52 = arith.constant 1.000000e+00 : f32
    %112 = vector.broadcast %cst_52 : f32 to vector<8x128xf32>
    %113 = arith.addf %112, %111 : vector<8x128xf32>
    %cst_53 = arith.constant 1.000000e+00 : f32
    %114 = vector.broadcast %cst_53 : f32 to vector<8x128xf32>
    %115 = arith.divf %114, %113 : vector<8x128xf32>
    %116 = math.tanh %108 : vector<8x128xf32>
    %117 = vector.extract_strided_slice %115 {offsets = [0, 0], sizes = [8, 32], strides = [1, 1]} : vector<8x128xf32> to vector<8x32xf32>
    %118 = vector.extract_strided_slice %115 {offsets = [0, 32], sizes = [8, 32], strides = [1, 1]} : vector<8x128xf32> to vector<8x32xf32>
    %119 = vector.extract_strided_slice %115 {offsets = [0, 96], sizes = [8, 32], strides = [1, 1]} : vector<8x128xf32> to vector<8x32xf32>
    %120 = vector.extract_strided_slice %116 {offsets = [0, 64], sizes = [8, 32], strides = [1, 1]} : vector<8x128xf32> to vector<8x32xf32>
    %121 = arith.mulf %118, %102 : vector<8x32xf32>
    %122 = arith.mulf %117, %120 : vector<8x32xf32>
    %123 = arith.addf %121, %122 : vector<8x32xf32>
    %124 = math.tanh %123 : vector<8x32xf32>
    %125 = arith.mulf %119, %124 : vector<8x32xf32>
    %c24_54 = arith.constant 24 : index
    %c0_55 = arith.constant 0 : index
    %126 = vector.load %arg14[%c24_54, %c0_55] : memref<64x32xf32, #tpu.memory_space<vmem>>, vector<8x32xf32>
    tpu.vector_store %arg14[%c24_54, %c0_55], %125 {strides = array<i32>} : memref<64x32xf32, #tpu.memory_space<vmem>>, vector<8x32xf32>,
    %c32 = arith.constant 32 : index
    %c0_56 = arith.constant 0 : index
    %127 = vector.load %arg13[%c32, %c0_56] : memref<64x128xf32, #tpu.memory_space<vmem>>, vector<8x128xf32>
    %cst_57 = arith.constant dense<0.000000e+00> : vector<8x128xf32>
    %128 = tpu.matmul %125, %40, %cst_57 {dimension_numbers = #tpu.dot_dimension_numbers<[1], [0], [0], [1], [0, 0, 1, 1], [], []>} : vector<8x32xf32>, vector<32x128xf32>, vector<8x128xf32> -> vector<8x128xf32>
    %129 = arith.addf %127, %128 : vector<8x128xf32>
    %cst_58 = arith.constant 0.000000e+00 : f32
    %130 = vector.broadcast %cst_58 : f32 to vector<8x128xf32>
    %131 = arith.subf %130, %129 : vector<8x128xf32>
    %132 = math.exp %131 : vector<8x128xf32>
    %cst_59 = arith.constant 1.000000e+00 : f32
    %133 = vector.broadcast %cst_59 : f32 to vector<8x128xf32>
    %134 = arith.addf %133, %132 : vector<8x128xf32>
    %cst_60 = arith.constant 1.000000e+00 : f32
    %135 = vector.broadcast %cst_60 : f32 to vector<8x128xf32>
    %136 = arith.divf %135, %134 : vector<8x128xf32>
    %137 = math.tanh %129 : vector<8x128xf32>
    %138 = vector.extract_strided_slice %136 {offsets = [0, 0], sizes = [8, 32], strides = [1, 1]} : vector<8x128xf32> to vector<8x32xf32>
    %139 = vector.extract_strided_slice %136 {offsets = [0, 32], sizes = [8, 32], strides = [1, 1]} : vector<8x128xf32> to vector<8x32xf32>
    %140 = vector.extract_strided_slice %136 {offsets = [0, 96], sizes = [8, 32], strides = [1, 1]} : vector<8x128xf32> to vector<8x32xf32>
    %141 = vector.extract_strided_slice %137 {offsets = [0, 64], sizes = [8, 32], strides = [1, 1]} : vector<8x128xf32> to vector<8x32xf32>
    %142 = arith.mulf %139, %123 : vector<8x32xf32>
    %143 = arith.mulf %138, %141 : vector<8x32xf32>
    %144 = arith.addf %142, %143 : vector<8x32xf32>
    %145 = math.tanh %144 : vector<8x32xf32>
    %146 = arith.mulf %140, %145 : vector<8x32xf32>
    %c32_61 = arith.constant 32 : index
    %c0_62 = arith.constant 0 : index
    %147 = vector.load %arg14[%c32_61, %c0_62] : memref<64x32xf32, #tpu.memory_space<vmem>>, vector<8x32xf32>
    tpu.vector_store %arg14[%c32_61, %c0_62], %146 {strides = array<i32>} : memref<64x32xf32, #tpu.memory_space<vmem>>, vector<8x32xf32>,
    %c40 = arith.constant 40 : index
    %c0_63 = arith.constant 0 : index
    %148 = vector.load %arg13[%c40, %c0_63] : memref<64x128xf32, #tpu.memory_space<vmem>>, vector<8x128xf32>
    %cst_64 = arith.constant dense<0.000000e+00> : vector<8x128xf32>
    %149 = tpu.matmul %146, %40, %cst_64 {dimension_numbers = #tpu.dot_dimension_numbers<[1], [0], [0], [1], [0, 0, 1, 1], [], []>} : vector<8x32xf32>, vector<32x128xf32>, vector<8x128xf32> -> vector<8x128xf32>
    %150 = arith.addf %148, %149 : vector<8x128xf32>
    %cst_65 = arith.constant 0.000000e+00 : f32
    %151 = vector.broadcast %cst_65 : f32 to vector<8x128xf32>
    %152 = arith.subf %151, %150 : vector<8x128xf32>
    %153 = math.exp %152 : vector<8x128xf32>
    %cst_66 = arith.constant 1.000000e+00 : f32
    %154 = vector.broadcast %cst_66 : f32 to vector<8x128xf32>
    %155 = arith.addf %154, %153 : vector<8x128xf32>
    %cst_67 = arith.constant 1.000000e+00 : f32
    %156 = vector.broadcast %cst_67 : f32 to vector<8x128xf32>
    %157 = arith.divf %156, %155 : vector<8x128xf32>
    %158 = math.tanh %150 : vector<8x128xf32>
    %159 = vector.extract_strided_slice %157 {offsets = [0, 0], sizes = [8, 32], strides = [1, 1]} : vector<8x128xf32> to vector<8x32xf32>
    %160 = vector.extract_strided_slice %157 {offsets = [0, 32], sizes = [8, 32], strides = [1, 1]} : vector<8x128xf32> to vector<8x32xf32>
    %161 = vector.extract_strided_slice %157 {offsets = [0, 96], sizes = [8, 32], strides = [1, 1]} : vector<8x128xf32> to vector<8x32xf32>
    %162 = vector.extract_strided_slice %158 {offsets = [0, 64], sizes = [8, 32], strides = [1, 1]} : vector<8x128xf32> to vector<8x32xf32>
    %163 = arith.mulf %160, %144 : vector<8x32xf32>
    %164 = arith.mulf %159, %162 : vector<8x32xf32>
    %165 = arith.addf %163, %164 : vector<8x32xf32>
    %166 = math.tanh %165 : vector<8x32xf32>
    %167 = arith.mulf %161, %166 : vector<8x32xf32>
    %c40_68 = arith.constant 40 : index
    %c0_69 = arith.constant 0 : index
    %168 = vector.load %arg14[%c40_68, %c0_69] : memref<64x32xf32, #tpu.memory_space<vmem>>, vector<8x32xf32>
    tpu.vector_store %arg14[%c40_68, %c0_69], %167 {strides = array<i32>} : memref<64x32xf32, #tpu.memory_space<vmem>>, vector<8x32xf32>,
    %c48 = arith.constant 48 : index
    %c0_70 = arith.constant 0 : index
    %169 = vector.load %arg13[%c48, %c0_70] : memref<64x128xf32, #tpu.memory_space<vmem>>, vector<8x128xf32>
    %cst_71 = arith.constant dense<0.000000e+00> : vector<8x128xf32>
    %170 = tpu.matmul %167, %40, %cst_71 {dimension_numbers = #tpu.dot_dimension_numbers<[1], [0], [0], [1], [0, 0, 1, 1], [], []>} : vector<8x32xf32>, vector<32x128xf32>, vector<8x128xf32> -> vector<8x128xf32>
    %171 = arith.addf %169, %170 : vector<8x128xf32>
    %cst_72 = arith.constant 0.000000e+00 : f32
    %172 = vector.broadcast %cst_72 : f32 to vector<8x128xf32>
    %173 = arith.subf %172, %171 : vector<8x128xf32>
    %174 = math.exp %173 : vector<8x128xf32>
    %cst_73 = arith.constant 1.000000e+00 : f32
    %175 = vector.broadcast %cst_73 : f32 to vector<8x128xf32>
    %176 = arith.addf %175, %174 : vector<8x128xf32>
    %cst_74 = arith.constant 1.000000e+00 : f32
    %177 = vector.broadcast %cst_74 : f32 to vector<8x128xf32>
    %178 = arith.divf %177, %176 : vector<8x128xf32>
    %179 = math.tanh %171 : vector<8x128xf32>
    %180 = vector.extract_strided_slice %178 {offsets = [0, 0], sizes = [8, 32], strides = [1, 1]} : vector<8x128xf32> to vector<8x32xf32>
    %181 = vector.extract_strided_slice %178 {offsets = [0, 32], sizes = [8, 32], strides = [1, 1]} : vector<8x128xf32> to vector<8x32xf32>
    %182 = vector.extract_strided_slice %178 {offsets = [0, 96], sizes = [8, 32], strides = [1, 1]} : vector<8x128xf32> to vector<8x32xf32>
    %183 = vector.extract_strided_slice %179 {offsets = [0, 64], sizes = [8, 32], strides = [1, 1]} : vector<8x128xf32> to vector<8x32xf32>
    %184 = arith.mulf %181, %165 : vector<8x32xf32>
    %185 = arith.mulf %180, %183 : vector<8x32xf32>
    %186 = arith.addf %184, %185 : vector<8x32xf32>
    %187 = math.tanh %186 : vector<8x32xf32>
    %188 = arith.mulf %182, %187 : vector<8x32xf32>
    %c48_75 = arith.constant 48 : index
    %c0_76 = arith.constant 0 : index
    %189 = vector.load %arg14[%c48_75, %c0_76] : memref<64x32xf32, #tpu.memory_space<vmem>>, vector<8x32xf32>
    tpu.vector_store %arg14[%c48_75, %c0_76], %188 {strides = array<i32>} : memref<64x32xf32, #tpu.memory_space<vmem>>, vector<8x32xf32>,
    %c56 = arith.constant 56 : index
    %c0_77 = arith.constant 0 : index
    %190 = vector.load %arg13[%c56, %c0_77] : memref<64x128xf32, #tpu.memory_space<vmem>>, vector<8x128xf32>
    %cst_78 = arith.constant dense<0.000000e+00> : vector<8x128xf32>
    %191 = tpu.matmul %188, %40, %cst_78 {dimension_numbers = #tpu.dot_dimension_numbers<[1], [0], [0], [1], [0, 0, 1, 1], [], []>} : vector<8x32xf32>, vector<32x128xf32>, vector<8x128xf32> -> vector<8x128xf32>
    %192 = arith.addf %190, %191 : vector<8x128xf32>
    %cst_79 = arith.constant 0.000000e+00 : f32
    %193 = vector.broadcast %cst_79 : f32 to vector<8x128xf32>
    %194 = arith.subf %193, %192 : vector<8x128xf32>
    %195 = math.exp %194 : vector<8x128xf32>
    %cst_80 = arith.constant 1.000000e+00 : f32
    %196 = vector.broadcast %cst_80 : f32 to vector<8x128xf32>
    %197 = arith.addf %196, %195 : vector<8x128xf32>
    %cst_81 = arith.constant 1.000000e+00 : f32
    %198 = vector.broadcast %cst_81 : f32 to vector<8x128xf32>
    %199 = arith.divf %198, %197 : vector<8x128xf32>
    %200 = math.tanh %192 : vector<8x128xf32>
    %201 = vector.extract_strided_slice %199 {offsets = [0, 0], sizes = [8, 32], strides = [1, 1]} : vector<8x128xf32> to vector<8x32xf32>
    %202 = vector.extract_strided_slice %199 {offsets = [0, 32], sizes = [8, 32], strides = [1, 1]} : vector<8x128xf32> to vector<8x32xf32>
    %203 = vector.extract_strided_slice %199 {offsets = [0, 96], sizes = [8, 32], strides = [1, 1]} : vector<8x128xf32> to vector<8x32xf32>
    %204 = vector.extract_strided_slice %200 {offsets = [0, 64], sizes = [8, 32], strides = [1, 1]} : vector<8x128xf32> to vector<8x32xf32>
    %205 = arith.mulf %202, %186 : vector<8x32xf32>
    %206 = arith.mulf %201, %204 : vector<8x32xf32>
    %207 = arith.addf %205, %206 : vector<8x32xf32>
    %208 = math.tanh %207 : vector<8x32xf32>
    %209 = arith.mulf %203, %208 : vector<8x32xf32>
    %c56_82 = arith.constant 56 : index
    %c0_83 = arith.constant 0 : index
    %210 = vector.load %arg14[%c56_82, %c0_83] : memref<64x32xf32, #tpu.memory_space<vmem>>, vector<8x32xf32>
    tpu.vector_store %arg14[%c56_82, %c0_83], %209 {strides = array<i32>} : memref<64x32xf32, #tpu.memory_space<vmem>>, vector<8x32xf32>,
    %c0_84 = arith.constant 0 : index
    %c0_85 = arith.constant 0 : index
    %211 = vector.load %arg14[%c0_84, %c0_85] : memref<64x32xf32, #tpu.memory_space<vmem>>, vector<64x32xf32>
    %212 = arith.truncf %211 : vector<64x32xf32> to vector<64x32xbf16>
    %c0_86 = arith.constant 0 : index
    %c0_87 = arith.constant 0 : index
    %213 = vector.load %arg9[%c0_86, %c0_87] : memref<32x32xbf16, #tpu.memory_space<vmem>>, vector<32x32xbf16>
    %cst_88 = arith.constant dense<0.000000e+00> : vector<64x32xf32>
    %214 = tpu.matmul %212, %213, %cst_88 {dimension_numbers = #tpu.dot_dimension_numbers<[1], [0], [0], [1], [0, 0, 1, 1], [], []>} : vector<64x32xbf16>, vector<32x32xbf16>, vector<64x32xf32> -> vector<64x32xf32>
    %c0_89 = arith.constant 0 : index
    %c0_90 = arith.constant 0 : index
    %215 = vector.load %arg10[%c0_89, %c0_90] : memref<1x32xf32, #tpu.memory_space<vmem>>, vector<1x32xf32>
    %216 = vector.broadcast %215 : vector<1x32xf32> to vector<64x32xf32>
    %217 = arith.addf %214, %216 : vector<64x32xf32>
    %cst_91 = arith.constant 0.000000e+00 : f32
    %218 = vector.broadcast %cst_91 : f32 to vector<64x32xf32>
    %219 = arith.maximumf %217, %218 : vector<64x32xf32>
    %c0_92 = arith.constant 0 : index
    %c0_93 = arith.constant 0 : index
    %220 = vector.load %arg11[%c0_92, %c0_93] : memref<1x32xf32, #tpu.memory_space<vmem>>, vector<1x32xf32>
    %cst_94 = arith.constant dense<0.000000e+00> : vector<1x64xf32>
    %221 = tpu.matmul %220, %219, %cst_94 {dimension_numbers = #tpu.dot_dimension_numbers<[1], [1], [0], [0], [0, 0, 1, 0], [], []>} : vector<1x32xf32>, vector<64x32xf32>, vector<1x64xf32> -> vector<1x64xf32>
    %c0_95 = arith.constant 0 : index
    %c0_96 = arith.constant 0 : index
    %c0_97 = arith.constant 0 : index
    %222 = vector.load %arg12[%c0_95, %c0_96, %c0_97] : memref<1x1x64xf32, #tpu.memory_space<vmem>>, vector<1x1x64xf32>
    %223 = vector.shape_cast %222 : vector<1x1x64xf32> to vector<1x64xf32>
    %224 = vector.shape_cast %221 : vector<1x64xf32> to vector<1x1x64xf32>
    tpu.vector_store %arg12[%c0_95, %c0_96, %c0_97], %224 {strides = array<i32>} : memref<1x1x64xf32, #tpu.memory_space<vmem>>, vector<1x1x64xf32>,
    return
  }
  func.func @transform_0(%arg0: i32) -> (i32, i32, i32) {
    %c0_i32 = arith.constant 0 : i32
    %c0_i32_0 = arith.constant 0 : i32
    %c0_i32_1 = arith.constant 0 : i32
    return %arg0, %c0_i32, %c0_i32_0 : i32, i32, i32
  }
  func.func @transform_1(%arg0: i32) -> (i32, i32) {
    %c0_i32 = arith.constant 0 : i32
    %c0_i32_0 = arith.constant 0 : i32
    %c0_i32_1 = arith.constant 0 : i32
    return %c0_i32, %c0_i32_0 : i32, i32
  }
  func.func @transform_2(%arg0: i32) -> (i32, i32) {
    %c0_i32 = arith.constant 0 : i32
    %c0_i32_0 = arith.constant 0 : i32
    %c0_i32_1 = arith.constant 0 : i32
    return %c0_i32, %c0_i32_0 : i32, i32
  }
  func.func @transform_3(%arg0: i32) -> (i32, i32) {
    %c0_i32 = arith.constant 0 : i32
    %c0_i32_0 = arith.constant 0 : i32
    %c0_i32_1 = arith.constant 0 : i32
    return %c0_i32, %c0_i32_0 : i32, i32
  }
  func.func @transform_4(%arg0: i32) -> (i32, i32) {
    %c0_i32 = arith.constant 0 : i32
    %c0_i32_0 = arith.constant 0 : i32
    %c0_i32_1 = arith.constant 0 : i32
    return %c0_i32, %c0_i32_0 : i32, i32
  }
  func.func @transform_5(%arg0: i32) -> (i32, i32) {
    %c0_i32 = arith.constant 0 : i32
    %c0_i32_0 = arith.constant 0 : i32
    %c0_i32_1 = arith.constant 0 : i32
    return %c0_i32, %c0_i32_0 : i32, i32
  }
  func.func @transform_6(%arg0: i32) -> (i32, i32) {
    %c0_i32 = arith.constant 0 : i32
    %c0_i32_0 = arith.constant 0 : i32
    %c0_i32_1 = arith.constant 0 : i32
    return %c0_i32, %c0_i32_0 : i32, i32
  }
  func.func @transform_7(%arg0: i32) -> (i32, i32) {
    %c0_i32 = arith.constant 0 : i32
    %c0_i32_0 = arith.constant 0 : i32
    %c0_i32_1 = arith.constant 0 : i32
    return %c0_i32, %c0_i32_0 : i32, i32
  }
  func.func @transform_8(%arg0: i32) -> (i32, i32) {
    %c0_i32 = arith.constant 0 : i32
    %c0_i32_0 = arith.constant 0 : i32
    %c0_i32_1 = arith.constant 0 : i32
    return %c0_i32, %c0_i32_0 : i32, i32
  }
  func.func @transform_9(%arg0: i32) -> (i32, i32) {
    %c0_i32 = arith.constant 0 : i32
    %c0_i32_0 = arith.constant 0 : i32
    %c0_i32_1 = arith.constant 0 : i32
    return %c0_i32, %c0_i32_0 : i32, i32
  }
  func.func @transform_10(%arg0: i32) -> (i32, i32) {
    %c0_i32 = arith.constant 0 : i32
    %c0_i32_0 = arith.constant 0 : i32
    %c0_i32_1 = arith.constant 0 : i32
    return %c0_i32, %c0_i32_0 : i32, i32
  }
  func.func @transform_11(%arg0: i32) -> (i32, i32, i32) {
    %c0_i32 = arith.constant 0 : i32
    %c0_i32_0 = arith.constant 0 : i32
    %c0_i32_1 = arith.constant 0 : i32
    return %arg0, %c0_i32, %c0_i32_0 : i32, i32, i32
  }
}

</mosaic_0001>

<llo_original>
// kernel: tpu_custom_call.1
$region0: #{tpu_custom_call.1}
  #allocation0 [shape = 'u32[]', space=smem, size = 0x4, offset = 0x4, fixed_abs, tag = 'smem constant byte address 0x4 - core index']
  #allocation1 [shape = 'u32[144,128]{1,0:T(1,128)}', space=vmem, size = 0x12000, scoped, tag = 'internal scratch']
  #allocation2 [shape = 'f32[64,128]{1,0:T(8,128)}', space=vmem, size = 0x8000, scoped, tag = 'scratch operand']
  #allocation3 [shape = 'f32[64,32]{1,0:T(8,128)}', space=vmem, size = 0x8000, scoped, tag = 'scratch operand']
  %s0 = inlined_call_operand.vmem [shape: bf16[1,64,8], index: 0, kind: input, shape index: {}]
  %s1 = inlined_call_operand.hbm [shape: bf16[8,32], index: 1, kind: input, shape index: {}]
  %s2 = inlined_call_operand.vmem [shape: f32[1,32], index: 2, kind: input, shape index: {}]
  %s3 = inlined_call_operand.vmem [shape: f32[1,32], index: 3, kind: input, shape index: {}]
  %s4 = inlined_call_operand.hbm [shape: f32[1,32], index: 4, kind: input, shape index: {}]
  %s5 = inlined_call_operand.vmem [shape: bf16[32,128], index: 5, kind: input, shape index: {}]
  %s6 = inlined_call_operand.vmem [shape: f32[32,128], index: 6, kind: input, shape index: {}]
  %s7 = inlined_call_operand.hbm [shape: f32[1,128], index: 7, kind: input, shape index: {}]
  %s8 = inlined_call_operand.vmem [shape: bf16[32,32], index: 8, kind: input, shape index: {}]
  %s9 = inlined_call_operand.vmem [shape: f32[1,32], index: 9, kind: input, shape index: {}]
  %s10 = inlined_call_operand.vmem [shape: f32[1,32], index: 10, kind: input, shape index: {}]
  %s11 = inlined_call_operand.hbm [shape: f32[1,1,64], index: 11, kind: output, shape index: {}]
  %s12 = sld [smem:[#allocation0]]
  $region66: #{tpu_custom_call.1} parent=0
    _
  %s14 = ssub.s32 1, %s12
  %s15 = scalar_select 0, %s14, %s12
  $region1: #{tpu_custom_call.1} parent=0
    #allocation4 [shape = 'u8[2048]{0}', space=vmem, size = 0x800, scoped, tag = 'input window, operand 1, single buffered']
    #allocation5 [shape = 's32[1]{0}', space=sflag, size = 0x4, scoped, tag = 'scoped memory for tpu_custom_call.1']
    #allocation6 [shape = 's32[1]{0}', space=sflag, size = 0x4, scoped, tag = 'scoped memory for tpu_custom_call.1']
    #allocation7 [shape = 'u8[512]{0}', space=vmem, size = 0x400, scoped, tag = 'input window, operand 4, single buffered']
    #allocation8 [shape = 's32[1]{0}', space=sflag, size = 0x4, scoped, tag = 'scoped memory for tpu_custom_call.1']
    #allocation9 [shape = 'u8[512]{0}', space=vmem, size = 0x400, scoped, tag = 'input window, operand 7, single buffered']
    #allocation10 [shape = 'u8[512]{0}', space=vmem, size = 0x400, scoped, tag = 'output window, operand 0, single buffered']
    %16 = vsyncpa [#allocation5], 0
    %17 = vsyncpa [#allocation8], 0
    %18 = vsyncpa [#allocation6], 0
    // Predicated region
    $region2: #{tpu_custom_call.1} parent=1 // pred_check
      _
    $region3: #{tpu_custom_call.1} parent=1 // pred_check_branch
      %20 = sbr.rel (0) target = $region5
    $region4: #{tpu_custom_call.1} parent=1 // pred_region
      _
    $region5: #{tpu_custom_call.1} parent=1 // pred_fallthru
      _
    // Predicated region
    $region6: #{tpu_custom_call.1} parent=1 // pred_check
      _
    $region7: #{tpu_custom_call.1} parent=1 // pred_check_branch
      %22 = sbr.rel (0) target = $region9
    $region8: #{tpu_custom_call.1} parent=1 // pred_region
      %s24 = ssub.s32 64, 64
      %25 = vsyncadd [#allocation5], %s24
      %s27 = sshll.u32 [#allocation4], 4
      %s28 = int_to_ptr.vmem [resolvable:$true] %s27
      %30 = dma.hbm_to_vmem [thread:$0]  %s1, 64, %s28, [#allocation5]
    $region9: #{tpu_custom_call.1} parent=1 // pred_fallthru
      _
    // Predicated region
    $region10: #{tpu_custom_call.1} parent=1 // pred_check
      _
    $region11: #{tpu_custom_call.1} parent=1 // pred_check_branch
      %32 = sbr.rel (0) target = $region13
    $region12: #{tpu_custom_call.1} parent=1 // pred_region
      _
    $region13: #{tpu_custom_call.1} parent=1 // pred_fallthru
      _
    // Predicated region
    $region14: #{tpu_custom_call.1} parent=1 // pred_check
      _
    $region15: #{tpu_custom_call.1} parent=1 // pred_check_branch
      %34 = sbr.rel (0) target = $region17
    $region16: #{tpu_custom_call.1} parent=1 // pred_region
      _
    $region17: #{tpu_custom_call.1} parent=1 // pred_fallthru
      _
    // Predicated region
    $region18: #{tpu_custom_call.1} parent=1 // pred_check
      _
    $region19: #{tpu_custom_call.1} parent=1 // pred_check_branch
      %36 = sbr.rel (0) target = $region21
    $region20: #{tpu_custom_call.1} parent=1 // pred_region
      %s38 = ssub.s32 16, 16
      %39 = vsyncadd [#allocation8], %s38
      %s41 = sshll.u32 [#allocation7], 4
      %s42 = int_to_ptr.vmem [resolvable:$true] %s41
      %44 = dma.hbm_to_vmem [thread:$0]  %s4, 16, %s42, [#allocation8]
    $region21: #{tpu_custom_call.1} parent=1 // pred_fallthru
      _
    // Predicated region
    $region22: #{tpu_custom_call.1} parent=1 // pred_check
      _
    $region23: #{tpu_custom_call.1} parent=1 // pred_check_branch
      %46 = sbr.rel (0) target = $region25
    $region24: #{tpu_custom_call.1} parent=1 // pred_region
      _
    $region25: #{tpu_custom_call.1} parent=1 // pred_fallthru
      _
    // Predicated region
    $region26: #{tpu_custom_call.1} parent=1 // pred_check
      _
    $region27: #{tpu_custom_call.1} parent=1 // pred_check_branch
      %48 = sbr.rel (0) target = $region29
    $region28: #{tpu_custom_call.1} parent=1 // pred_region
      _
    $region29: #{tpu_custom_call.1} parent=1 // pred_fallthru
      _
    // Predicated region
    $region30: #{tpu_custom_call.1} parent=1 // pred_check
      _
    $region31: #{tpu_custom_call.1} parent=1 // pred_check_branch
      %50 = sbr.rel (0) target = $region33
    $region32: #{tpu_custom_call.1} parent=1 // pred_region
      %s52 = ssub.s32 16, 16
      %53 = vsyncadd [#allocation8], %s52
      %s55 = sshll.u32 [#allocation9], 4
      %s56 = int_to_ptr.vmem [resolvable:$true] %s55
      %58 = dma.hbm_to_vmem [thread:$0]  %s7, 16, %s56, [#allocation8]
    $region33: #{tpu_custom_call.1} parent=1 // pred_fallthru
      _
    // Predicated region
    $region34: #{tpu_custom_call.1} parent=1 // pred_check
      _
    $region35: #{tpu_custom_call.1} parent=1 // pred_check_branch
      %60 = sbr.rel (0) target = $region37
    $region36: #{tpu_custom_call.1} parent=1 // pred_region
      _
    $region37: #{tpu_custom_call.1} parent=1 // pred_fallthru
      _
    // Predicated region
    $region38: #{tpu_custom_call.1} parent=1 // pred_check
      _
    $region39: #{tpu_custom_call.1} parent=1 // pred_check_branch
      %62 = sbr.rel (0) target = $region41
    $region40: #{tpu_custom_call.1} parent=1 // pred_region
      _
    $region41: #{tpu_custom_call.1} parent=1 // pred_fallthru
      _
    // Predicated region
    $region42: #{tpu_custom_call.1} parent=1 // pred_check
      _
    $region43: #{tpu_custom_call.1} parent=1 // pred_check_branch
      %64 = sbr.rel (0) target = $region45
    $region44: #{tpu_custom_call.1} parent=1 // pred_region
      _
    $region45: #{tpu_custom_call.1} parent=1 // pred_fallthru
      _
    // Predicated region
    $region46: #{tpu_custom_call.1} parent=1 // pred_check
      _
    $region47: #{tpu_custom_call.1} parent=1 // pred_check_branch
      %66 = sbr.rel (0) target = $region49
    $region48: #{tpu_custom_call.1} parent=1 // pred_region
      %67 = dma.done [#allocation5], 64
    $region49: #{tpu_custom_call.1} parent=1 // pred_fallthru
      _
    // Predicated region
    $region50: #{tpu_custom_call.1} parent=1 // pred_check
      _
    $region51: #{tpu_custom_call.1} parent=1 // pred_check_branch
      %69 = sbr.rel (0) target = $region53
    $region52: #{tpu_custom_call.1} parent=1 // pred_region
      %70 = dma.done [#allocation8], 16
    $region53: #{tpu_custom_call.1} parent=1 // pred_fallthru
      _
    // Predicated region
    $region54: #{tpu_custom_call.1} parent=1 // pred_check
      _
    $region55: #{tpu_custom_call.1} parent=1 // pred_check_branch
      %72 = sbr.rel (0) target = $region57
    $region56: #{tpu_custom_call.1} parent=1 // pred_region
      %73 = dma.done [#allocation8], 16
    $region57: #{tpu_custom_call.1} parent=1 // pred_fallthru
      _
    %v75 = vld [vmem:[%s0] sm:$0xf]
    %v76 = vld [vmem:[%s0 + $0x4] sm:$0xf]
    %v77 = vld [vmem:[%s0 + $0x8] sm:$0xf]
    %v78 = vld [vmem:[%s0 + $0xc] sm:$0xf]
    %v79 = vld [vmem:[%s0 + $0x10] sm:$0xf]
    %v80 = vld [vmem:[%s0 + $0x14] sm:$0xf]
    %v81 = vld [vmem:[%s0 + $0x18] sm:$0xf]
    %v82 = vld [vmem:[%s0 + $0x1c] sm:$0xf]
    %v83 = vld [vmem:[#allocation4] sm:$0xf]
    %v84 = vld [vmem:[%s2] sm:$0x1]
    %v86 = vlaneseq
    %v87 = vshrl.u32 %v86, 7
    %v88 = vsub.s32 0, %v87
    %v89 = vrot.slane %v84, %v88
    %v99 = vunpack.c.l.b16 %v75
    %v100 = vunpack.c.l.b16 %v76
    %v101 = vunpack.c.l.b16 %v77
    %v102 = vunpack.c.l.b16 %v78
    %v103 = vunpack.c.l.b16 %v79
    %v104 = vunpack.c.l.b16 %v80
    %v105 = vunpack.c.l.b16 %v81
    %v106 = vunpack.c.l.b16 %v82
    %v107 = vpack.c.b16 %v100, %v99
    %v108 = vpack.c.b16 %v102, %v101
    %v109 = vpack.c.b16 %v104, %v103
    %v110 = vpack.c.b16 %v106, %v105
    %vm111 = vcmask 64512
    %v113 = vsel %vm111, %v107, 0
    %v116 = vsel %vm111, %v108, 0
    %v119 = vsel %vm111, %v109, 0
    %v122 = vsel %vm111, %v110, 0
    %vm124 = vcmask 1043456
    %v126 = vsel %vm124, %v83, 0
    %128 = vmatprep.subr.bf16.mxu0 0
    %129 = vmatpush1.bf16.msra.mxu0 %v126
    %130 = vmatprep.subr.bf16.mxu0 0
    %131 = vmatpush1.bf16.msra.mxu0 0
    %132 = vmatprep.subr.bf16.mxu0 0
    %133 = vmatpush1.bf16.msra.mxu0 0
    %134 = vmatprep.subr.bf16.mxu0 0
    %135 = vmatpush1.bf16.msra.mxu0 0
    %136 = vmatprep.subr.bf16.mxu0 0
    %137 = vmatpush1.bf16.msra.mxu0 0
    %138 = vmatprep.subr.bf16.mxu0 0
    %139 = vmatpush1.bf16.msra.mxu0 0
    %140 = vmatprep.subr.bf16.mxu0 0
    %141 = vmatpush1.bf16.msra.mxu0 0
    %142 = vmatprep.subr.bf16.mxu0 0
    %143 = vmatpush1.bf16.msra.mxu0 0
    %144 = vmatprep.subr.bf16.mxu0 0
    %145 = vmatpush1.bf16.msra.mxu0 0
    %146 = vmatprep.subr.bf16.mxu0 0
    %147 = vmatpush1.bf16.msra.mxu0 0
    %148 = vmatprep.subr.bf16.mxu0 0
    %149 = vmatpush1.bf16.msra.mxu0 0
    %150 = vmatprep.subr.bf16.mxu0 0
    %151 = vmatpush1.bf16.msra.mxu0 0
    %152 = vmatprep.subr.bf16.mxu0 0
    %153 = vmatpush1.bf16.msra.mxu0 0
    %154 = vmatprep.subr.bf16.mxu0 0
    %155 = vmatpush1.bf16.msra.mxu0 0
    %156 = vmatprep.subr.bf16.mxu0 0
    %157 = vmatpush1.bf16.msra.mxu0 0
    %158 = vmatprep.subr.bf16.mxu0 0
    %159 = vmatpush1.bf16.msra.mxu0 0
    %160 = vmatprep.mubr.bf16.mxu0 0
    %161 = vmatmul.mubr.bf16.gmra.mrb[0].mxu0 %v113
    %v162 = vpop.f32.mrb[0].mxu0
    %v163 = vadd.f32 %v89, %v162
    %v164 = vpop.f32.mrb[0].mxu0
    %v165 = vpop.f32.mrb[0].mxu0
    %v166 = vadd.f32 %v89, %v165
    %v167 = vpop.f32.mrb[0].mxu0
    %168 = vmatprep.mubr.bf16.mxu0 0
    %169 = vmatmul.mubr.bf16.gmra.mrb[0].mxu0 %v116
    %v170 = vpop.f32.mrb[0].mxu0
    %v171 = vadd.f32 %v89, %v170
    %v172 = vpop.f32.mrb[0].mxu0
    %v173 = vpop.f32.mrb[0].mxu0
    %v174 = vadd.f32 %v89, %v173
    %v175 = vpop.f32.mrb[0].mxu0
    %176 = vmatprep.mubr.bf16.mxu0 0
    %177 = vmatmul.mubr.bf16.gmra.mrb[0].mxu0 %v119
    %v178 = vpop.f32.mrb[0].mxu0
    %v179 = vadd.f32 %v89, %v178
    %v180 = vpop.f32.mrb[0].mxu0
    %v181 = vpop.f32.mrb[0].mxu0
    %v182 = vadd.f32 %v89, %v181
    %v183 = vpop.f32.mrb[0].mxu0
    %184 = vmatprep.mubr.bf16.mxu0 0
    %185 = vmatmul.mubr.bf16.gmra.mrb[0].mxu0 %v122
    %v186 = vpop.f32.mrb[0].mxu0
    %v187 = vadd.f32 %v89, %v186
    %v188 = vpop.f32.mrb[0].mxu0
    %v189 = vpop.f32.mrb[0].mxu0
    %v190 = vadd.f32 %v89, %v189
    %v191 = vpop.f32.mrb[0].mxu0
    %192 = vdwg.mxu0
    %v193 = vmax.f32 %v163, 0.0
    %v194 = vmax.f32 %v166, 0.0
    %v195 = vmax.f32 %v171, 0.0
    %v196 = vmax.f32 %v174, 0.0
    %v197 = vmax.f32 %v179, 0.0
    %v198 = vmax.f32 %v182, 0.0
    %v199 = vmax.f32 %v187, 0.0
    %v200 = vmax.f32 %v190, 0.0
    %vm201 = vcmask 261120
    %v202 = vsel %vm201, %v193, 0.0
    %203 = vadd.xlane.f32.xlu0 %v202
    %v204 = vpop.xlane.xlu0 %203
    %v205 = vsel %vm201, %v194, 0.0
    %206 = vadd.xlane.f32.xlu0 %v205
    %v207 = vpop.xlane.xlu0 %206
    %v208 = vsel %vm201, %v195, 0.0
    %209 = vadd.xlane.f32.xlu0 %v208
    %v210 = vpop.xlane.xlu0 %209
    %v211 = vsel %vm201, %v196, 0.0
    %212 = vadd.xlane.f32.xlu0 %v211
    %v213 = vpop.xlane.xlu0 %212
    %v214 = vsel %vm201, %v197, 0.0
    %215 = vadd.xlane.f32.xlu0 %v214
    %v216 = vpop.xlane.xlu0 %215
    %v217 = vsel %vm201, %v198, 0.0
    %218 = vadd.xlane.f32.xlu0 %v217
    %v219 = vpop.xlane.xlu0 %218
    %v220 = vsel %vm201, %v199, 0.0
    %221 = vadd.xlane.f32.xlu0 %v220
    %v222 = vpop.xlane.xlu0 %221
    %v223 = vsel %vm201, %v200, 0.0
    %224 = vadd.xlane.f32.xlu0 %v223
    %v225 = vpop.xlane.xlu0 %224
    %v226 = vrcp.pop 32.0
    %v227 = vmul.f32 %v204, %v226
    %v228 = vmul.f32 %v207, %v226
    %v229 = vmul.f32 %v210, %v226
    %v230 = vmul.f32 %v213, %v226
    %v231 = vmul.f32 %v216, %v226
    %v232 = vmul.f32 %v219, %v226
    %v233 = vmul.f32 %v222, %v226
    %v234 = vmul.f32 %v225, %v226
    %v235 = vsub.f32 %v193, %v227
    %v236 = vsub.f32 %v194, %v228
    %v237 = vsub.f32 %v195, %v229
    %v238 = vsub.f32 %v196, %v230
    %v239 = vsub.f32 %v197, %v231
    %v240 = vsub.f32 %v198, %v232
    %v241 = vsub.f32 %v199, %v233
    %v242 = vsub.f32 %v200, %v234
    %v243 = vmul.f32 %v235, %v235
    %v244 = vmul.f32 %v236, %v236
    %v245 = vmul.f32 %v237, %v237
    %v246 = vmul.f32 %v238, %v238
    %v247 = vmul.f32 %v239, %v239
    %v248 = vmul.f32 %v240, %v240
    %v249 = vmul.f32 %v241, %v241
    %v250 = vmul.f32 %v242, %v242
    %v251 = vsel %vm201, %v243, 0.0
    %252 = vadd.xlane.f32.xlu0 %v251
    %v253 = vpop.xlane.xlu0 %252
    %v254 = vsel %vm201, %v244, 0.0
    %255 = vadd.xlane.f32.xlu0 %v254
    %v256 = vpop.xlane.xlu0 %255
    %v257 = vsel %vm201, %v245, 0.0
    %258 = vadd.xlane.f32.xlu0 %v257
    %v259 = vpop.xlane.xlu0 %258
    %v260 = vsel %vm201, %v246, 0.0
    %261 = vadd.xlane.f32.xlu0 %v260
    %v262 = vpop.xlane.xlu0 %261
    %v263 = vsel %vm201, %v247, 0.0
    %264 = vadd.xlane.f32.xlu0 %v263
    %v265 = vpop.xlane.xlu0 %264
    %v266 = vsel %vm201, %v248, 0.0
    %267 = vadd.xlane.f32.xlu0 %v266
    %v268 = vpop.xlane.xlu0 %267
    %v269 = vsel %vm201, %v249, 0.0
    %270 = vadd.xlane.f32.xlu0 %v269
    %v271 = vpop.xlane.xlu0 %270
    %v272 = vsel %vm201, %v250, 0.0
    %273 = vadd.xlane.f32.xlu0 %v272
    %v274 = vpop.xlane.xlu0 %273
    %v275 = vmul.f32 %v253, %v226
    %v276 = vmul.f32 %v256, %v226
    %v277 = vmul.f32 %v259, %v226
    %v278 = vmul.f32 %v262, %v226
    %v279 = vmul.f32 %v265, %v226
    %v280 = vmul.f32 %v268, %v226
    %v281 = vmul.f32 %v271, %v226
    %v282 = vmul.f32 %v274, %v226
    %v283 = vadd.f32 %v275, 1e-05
    %v284 = vadd.f32 %v276, 1e-05
    %v285 = vadd.f32 %v277, 1e-05
    %v286 = vadd.f32 %v278, 1e-05
    %v287 = vadd.f32 %v279, 1e-05
    %v288 = vadd.f32 %v280, 1e-05
    %v289 = vadd.f32 %v281, 1e-05
    %v290 = vadd.f32 %v282, 1e-05
    %v291 = vrsqrt.pop %v283
    %v292 = vrsqrt.pop %v284
    %v293 = vrsqrt.pop %v285
    %v294 = vrsqrt.pop %v286
    %v295 = vrsqrt.pop %v287
    %v296 = vrsqrt.pop %v288
    %v297 = vrsqrt.pop %v289
    %v298 = vrsqrt.pop %v290
    %v299 = vmul.f32 %v235, %v291
    %v300 = vmul.f32 %v236, %v292
    %v301 = vmul.f32 %v237, %v293
    %v302 = vmul.f32 %v238, %v294
    %v303 = vmul.f32 %v239, %v295
    %v304 = vmul.f32 %v240, %v296
    %v305 = vmul.f32 %v241, %v297
    %v306 = vmul.f32 %v242, %v298
    %v307 = vld [vmem:[%s3] sm:$0x1]
    %v309 = vlaneseq
    %v310 = vshrl.u32 %v309, 7
    %v311 = vsub.s32 0, %v310
    %v312 = vrot.slane %v307, %v311
    %v314 = vmul.f32 %v299, %v312
    %v315 = vmul.f32 %v300, %v312
    %v316 = vmul.f32 %v301, %v312
    %v317 = vmul.f32 %v302, %v312
    %v318 = vmul.f32 %v303, %v312
    %v319 = vmul.f32 %v304, %v312
    %v320 = vmul.f32 %v305, %v312
    %v321 = vmul.f32 %v306, %v312
    %v322 = vld [vmem:[#allocation7] sm:$0x1]
    %v324 = vlaneseq
    %v325 = vshrl.u32 %v324, 7
    %v326 = vsub.s32 0, %v325
    %v327 = vrot.slane %v322, %v326
    %v329 = vadd.f32 %v314, %v327
    %v330 = vadd.f32 %v315, %v327
    %v331 = vadd.f32 %v316, %v327
    %v332 = vadd.f32 %v317, %v327
    %v333 = vadd.f32 %v318, %v327
    %v334 = vadd.f32 %v319, %v327
    %v335 = vadd.f32 %v320, %v327
    %v336 = vadd.f32 %v321, %v327
    %v337 = vpack.c.bf16 %v330, %v329
    %v338 = vpack.c.bf16 %v332, %v331
    %v339 = vpack.c.bf16 %v334, %v333
    %v340 = vpack.c.bf16 %v336, %v335
    %v341 = vld [vmem:[%s5] sm:$0xf]
    %v342 = vld [vmem:[%s5 + $0x4] sm:$0xf]
    %v343 = vld [vmem:[%s5 + $0x8] sm:$0xf]
    %v344 = vld [vmem:[%s5 + $0xc] sm:$0xf]
    %v345 = vld [vmem:[#allocation9] sm:$0x1]
    %v347 = vlaneseq
    %v348 = vshrl.u32 %v347, 7
    %v349 = vsub.s32 0, %v348
    %v350 = vrot.slane %v345, %v349
    %v356 = vunpack.c.l.b16 %v341
    %v357 = vunpack.c.l.b16 %v342
    %v358 = vunpack.c.l.b16 %v343
    %v359 = vunpack.c.l.b16 %v344
    %v360 = vpack.c.b16 %v357, %v356
    %v361 = vpack.c.b16 %v359, %v358
    %v365 = vsel %vm201, %v337, 0
    %v368 = vsel %vm201, %v338, 0
    %v371 = vsel %vm201, %v339, 0
    %v374 = vsel %vm201, %v340, 0
    %376 = vmatprep.subr.bf16.mxu0 0
    %377 = vmatpush1.bf16.msra.mxu0 %v360
    %378 = vmatprep.subr.bf16.mxu0 0
    %379 = vmatpush1.bf16.msra.mxu0 %v361
    %380 = vmatprep.subr.bf16.mxu0 0
    %381 = vmatpush1.bf16.msra.mxu0 0
    %382 = vmatprep.subr.bf16.mxu0 0
    %383 = vmatpush1.bf16.msra.mxu0 0
    %384 = vmatprep.subr.bf16.mxu0 0
    %385 = vmatpush1.bf16.msra.mxu0 0
    %386 = vmatprep.subr.bf16.mxu0 0
    %387 = vmatpush1.bf16.msra.mxu0 0
    %388 = vmatprep.subr.bf16.mxu0 0
    %389 = vmatpush1.bf16.msra.mxu0 0
    %390 = vmatprep.subr.bf16.mxu0 0
    %391 = vmatpush1.bf16.msra.mxu0 0
    %392 = vmatprep.subr.bf16.mxu0 0
    %393 = vmatpush1.bf16.msra.mxu0 0
    %394 = vmatprep.subr.bf16.mxu0 0
    %395 = vmatpush1.bf16.msra.mxu0 0
    %396 = vmatprep.subr.bf16.mxu0 0
    %397 = vmatpush1.bf16.msra.mxu0 0
    %398 = vmatprep.subr.bf16.mxu0 0
    %399 = vmatpush1.bf16.msra.mxu0 0
    %400 = vmatprep.subr.bf16.mxu0 0
    %401 = vmatpush1.bf16.msra.mxu0 0
    %402 = vmatprep.subr.bf16.mxu0 0
    %403 = vmatpush1.bf16.msra.mxu0 0
    %404 = vmatprep.subr.bf16.mxu0 0
    %405 = vmatpush1.bf16.msra.mxu0 0
    %406 = vmatprep.subr.bf16.mxu0 0
    %407 = vmatpush1.bf16.msra.mxu0 0
    %408 = vmatprep.mubr.bf16.mxu0 0
    %409 = vmatmul.mubr.bf16.gmra.mrb[0].mxu0 %v365
    %v410 = vpop.f32.mrb[0].mxu0
    %v411 = vadd.f32 %v350, %v410
    %v412 = vpop.f32.mrb[0].mxu0
    %v413 = vpop.f32.mrb[0].mxu0
    %v414 = vadd.f32 %v350, %v413
    %v415 = vpop.f32.mrb[0].mxu0
    %416 = vmatprep.mubr.bf16.mxu0 0
    %417 = vmatmul.mubr.bf16.gmra.mrb[0].mxu0 %v368
    %v418 = vpop.f32.mrb[0].mxu0
    %v419 = vadd.f32 %v350, %v418
    %v420 = vpop.f32.mrb[0].mxu0
    %v421 = vpop.f32.mrb[0].mxu0
    %v422 = vadd.f32 %v350, %v421
    %v423 = vpop.f32.mrb[0].mxu0
    %424 = vmatprep.mubr.bf16.mxu0 0
    %425 = vmatmul.mubr.bf16.gmra.mrb[0].mxu0 %v371
    %v426 = vpop.f32.mrb[0].mxu0
    %v427 = vadd.f32 %v350, %v426
    %v428 = vpop.f32.mrb[0].mxu0
    %v429 = vpop.f32.mrb[0].mxu0
    %v430 = vadd.f32 %v350, %v429
    %v431 = vpop.f32.mrb[0].mxu0
    %432 = vmatprep.mubr.bf16.mxu0 0
    %433 = vmatmul.mubr.bf16.gmra.mrb[0].mxu0 %v374
    %v434 = vpop.f32.mrb[0].mxu0
    %v435 = vadd.f32 %v350, %v434
    %v436 = vpop.f32.mrb[0].mxu0
    %v437 = vpop.f32.mrb[0].mxu0
    %v438 = vadd.f32 %v350, %v437
    %v439 = vpop.f32.mrb[0].mxu0
    %440 = vdwg.mxu0
    %441 = vst [vmem:[#allocation2] sm:$0xff] %v411
    %442 = vst [vmem:[#allocation2 + $0x8] sm:$0xff] %v414
    %443 = vst [vmem:[#allocation2 + $0x10] sm:$0xff] %v419
    %444 = vst [vmem:[#allocation2 + $0x18] sm:$0xff] %v422
    %445 = vst [vmem:[#allocation2 + $0x20] sm:$0xff] %v427
    %446 = vst [vmem:[#allocation2 + $0x28] sm:$0xff] %v430
    %447 = vst [vmem:[#allocation2 + $0x30] sm:$0xff] %v435
    %448 = vst [vmem:[#allocation2 + $0x38] sm:$0xff] %v438
    %v449 = vld [vmem:[%s6] sm:$0xff]
    %v450 = vld [vmem:[%s6 + $0x8] sm:$0xff]
    %v451 = vld [vmem:[%s6 + $0x10] sm:$0xff]
    %v452 = vld [vmem:[%s6 + $0x18] sm:$0xff]
    %v453 = vld [vmem:[#allocation2] sm:$0xff]
    %v455 = vsel %vm201, 0.0, 0
    %457 = vmatprep.subr.mxu0 0.0
    %458 = vmatpush1.msra.mxu0 %v449
    %459 = vmatprep.subr.mxu0 0.0
    %460 = vmatpush1.msra.mxu0 %v450
    %461 = vmatprep.subr.mxu0 0.0
    %462 = vmatpush1.msra.mxu0 %v451
    %463 = vmatprep.subr.mxu0 0.0
    %464 = vmatpush1.msra.mxu0 %v452
    %465 = vmatprep.subr.mxu0 0.0
    %466 = vmatpush1.msra.mxu0 0.0
    %467 = vmatprep.subr.mxu0 0.0
    %468 = vmatpush1.msra.mxu0 0.0
    %469 = vmatprep.subr.mxu0 0.0
    %470 = vmatpush1.msra.mxu0 0.0
    %471 = vmatprep.subr.mxu0 0.0
    %472 = vmatpush1.msra.mxu0 0.0
    %473 = vmatprep.subr.mxu0 0.0
    %474 = vmatpush1.msra.mxu0 0.0
    %475 = vmatprep.subr.mxu0 0.0
    %476 = vmatpush1.msra.mxu0 0.0
    %477 = vmatprep.subr.mxu0 0.0
    %478 = vmatpush1.msra.mxu0 0.0
    %479 = vmatprep.subr.mxu0 0.0
    %480 = vmatpush1.msra.mxu0 0.0
    %481 = vmatprep.subr.mxu0 0.0
    %482 = vmatpush1.msra.mxu0 0.0
    %483 = vmatprep.subr.mxu0 0.0
    %484 = vmatpush1.msra.mxu0 0.0
    %485 = vmatprep.subr.mxu0 0.0
    %486 = vmatpush1.msra.mxu0 0.0
    %487 = vmatprep.subr.mxu0 0.0
    %488 = vmatpush1.msra.mxu0 0.0
    %489 = vmatprep.subr.mxu0 0.0
    %490 = vmatpush1.msra.mxu0 0.0
    %491 = vmatprep.subr.mxu0 0.0
    %492 = vmatpush1.msra.mxu0 0.0
    %493 = vmatprep.subr.mxu0 0.0
    %494 = vmatpush1.msra.mxu0 0.0
    %495 = vmatprep.subr.mxu0 0.0
    %496 = vmatpush1.msra.mxu0 0.0
    %497 = vmatprep.subr.mxu0 0.0
    %498 = vmatpush1.msra.mxu0 0.0
    %499 = vmatprep.subr.mxu0 0.0
    %500 = vmatpush1.msra.mxu0 0.0
    %501 = vmatprep.subr.mxu0 0.0
    %502 = vmatpush1.msra.mxu0 0.0
    %503 = vmatprep.subr.mxu0 0.0
    %504 = vmatpush1.msra.mxu0 0.0
    %505 = vmatprep.subr.mxu0 0.0
    %506 = vmatpush1.msra.mxu0 0.0
    %507 = vmatprep.subr.mxu0 0.0
    %508 = vmatpush1.msra.mxu0 0.0
    %509 = vmatprep.subr.mxu0 0.0
    %510 = vmatpush1.msra.mxu0 0.0
    %511 = vmatprep.subr.mxu0 0.0
    %512 = vmatpush1.msra.mxu0 0.0
    %513 = vmatprep.subr.mxu0 0.0
    %514 = vmatpush1.msra.mxu0 0.0
    %515 = vmatprep.subr.mxu0 0.0
    %516 = vmatpush1.msra.mxu0 0.0
    %517 = vmatprep.subr.mxu0 0.0
    %518 = vmatpush1.msra.mxu0 0.0
    %519 = vmatprep.subr.mxu0 0.0
    %520 = vmatpush1.msra.mxu0 0.0
    %521 = vmatprep.mubr.f32.mxu0 0.0
    %522 = vmatmul.mubr.f32.gmra.mrb[0].mxu0 %v455
    %v523 = vpop.f32.mrb[0].mxu0
    %v524 = vadd.f32 0.0, %v523
    %v525 = vpop.f32.mrb[0].mxu0
    %526 = vdwg.mxu0
    %v527 = vadd.f32 %v453, %v524
    %v528 = vsub.f32 0.0, %v527
    %v529 = vmul.f32 %v528, 1.442695
    %v530 = vpow.pop %v529
    %v531 = vadd.f32 %v530, 1.0
    %v532 = vrcp.pop %v531
    %v533 = vmul.f32 1.0, %v532
    %v534 = vtanh.pop %v527
    %v535 = vmul.f32 %v533, 0.0
    %537 = vrot.lane.b32.xlu0 %v534, 64
    %v538 = vpop.permute.xlu0 %537
    %v540 = vmul.f32 %v533, %v538
    %542 = vrot.lane.b32.xlu0 %v540, 32
    %v543 = vpop.permute.xlu0 %542
    %v545 = vadd.f32 %v535, %v543
    %v546 = vtanh.pop %v545
    %548 = vrot.lane.b32.xlu0 %v546, 64
    %v549 = vpop.permute.xlu0 %548
    %v551 = vmul.f32 %v533, %v549
    %553 = vrot.lane.b32.xlu0 %v551, 32
    %v554 = vpop.permute.xlu0 %553
    %556 = vst.msk [vmem:[#allocation3] sm:$0xff] %vm201, %v554
    %v557 = vld [vmem:[#allocation2 + $0x8] sm:$0xff]
    %v558 = vsel %vm201, %v554, 0
    %560 = vmatprep.subr.mxu0 0.0
    %561 = vmatpush1.msra.mxu0 %v449
    %562 = vmatprep.subr.mxu0 0.0
    %563 = vmatpush1.msra.mxu0 %v450
    %564 = vmatprep.subr.mxu0 0.0
    %565 = vmatpush1.msra.mxu0 %v451
    %566 = vmatprep.subr.mxu0 0.0
    %567 = vmatpush1.msra.mxu0 %v452
    %568 = vmatprep.subr.mxu0 0.0
    %569 = vmatpush1.msra.mxu0 0.0
    %570 = vmatprep.subr.mxu0 0.0
    %571 = vmatpush1.msra.mxu0 0.0
    %572 = vmatprep.subr.mxu0 0.0
    %573 = vmatpush1.msra.mxu0 0.0
    %574 = vmatprep.subr.mxu0 0.0
    %575 = vmatpush1.msra.mxu0 0.0
    %576 = vmatprep.subr.mxu0 0.0
    %577 = vmatpush1.msra.mxu0 0.0
    %578 = vmatprep.subr.mxu0 0.0
    %579 = vmatpush1.msra.mxu0 0.0
    %580 = vmatprep.subr.mxu0 0.0
    %581 = vmatpush1.msra.mxu0 0.0
    %582 = vmatprep.subr.mxu0 0.0
    %583 = vmatpush1.msra.mxu0 0.0
    %584 = vmatprep.subr.mxu0 0.0
    %585 = vmatpush1.msra.mxu0 0.0
    %586 = vmatprep.subr.mxu0 0.0
    %587 = vmatpush1.msra.mxu0 0.0
    %588 = vmatprep.subr.mxu0 0.0
    %589 = vmatpush1.msra.mxu0 0.0
    %590 = vmatprep.subr.mxu0 0.0
    %591 = vmatpush1.msra.mxu0 0.0
    %592 = vmatprep.subr.mxu0 0.0
    %593 = vmatpush1.msra.mxu0 0.0
    %594 = vmatprep.subr.mxu0 0.0
    %595 = vmatpush1.msra.mxu0 0.0
    %596 = vmatprep.subr.mxu0 0.0
    %597 = vmatpush1.msra.mxu0 0.0
    %598 = vmatprep.subr.mxu0 0.0
    %599 = vmatpush1.msra.mxu0 0.0
    %600 = vmatprep.subr.mxu0 0.0
    %601 = vmatpush1.msra.mxu0 0.0
    %602 = vmatprep.subr.mxu0 0.0
    %603 = vmatpush1.msra.mxu0 0.0
    %604 = vmatprep.subr.mxu0 0.0
    %605 = vmatpush1.msra.mxu0 0.0
    %606 = vmatprep.subr.mxu0 0.0
    %607 = vmatpush1.msra.mxu0 0.0
    %608 = vmatprep.subr.mxu0 0.0
    %609 = vmatpush1.msra.mxu0 0.0
    %610 = vmatprep.subr.mxu0 0.0
    %611 = vmatpush1.msra.mxu0 0.0
    %612 = vmatprep.subr.mxu0 0.0
    %613 = vmatpush1.msra.mxu0 0.0
    %614 = vmatprep.subr.mxu0 0.0
    %615 = vmatpush1.msra.mxu0 0.0
    %616 = vmatprep.subr.mxu0 0.0
    %617 = vmatpush1.msra.mxu0 0.0
    %618 = vmatprep.subr.mxu0 0.0
    %619 = vmatpush1.msra.mxu0 0.0
    %620 = vmatprep.subr.mxu0 0.0
    %621 = vmatpush1.msra.mxu0 0.0
    %622 = vmatprep.subr.mxu0 0.0
    %623 = vmatpush1.msra.mxu0 0.0
    %624 = vmatprep.mubr.f32.mxu0 0.0
    %625 = vmatmul.mubr.f32.gmra.mrb[0].mxu0 %v558
    %v626 = vpop.f32.mrb[0].mxu0
    %v627 = vadd.f32 0.0, %v626
    %v628 = vpop.f32.mrb[0].mxu0
    %629 = vdwg.mxu0
    %v630 = vadd.f32 %v557, %v627
    %v631 = vsub.f32 0.0, %v630
    %v632 = vmul.f32 %v631, 1.442695
    %v633 = vpow.pop %v632
    %v634 = vadd.f32 %v633, 1.0
    %v635 = vrcp.pop %v634
    %v636 = vmul.f32 1.0, %v635
    %v637 = vtanh.pop %v630
    %v638 = vmul.f32 %v636, %v545
    %640 = vrot.lane.b32.xlu0 %v637, 64
    %v641 = vpop.permute.xlu0 %640
    %v643 = vmul.f32 %v636, %v641
    %645 = vrot.lane.b32.xlu0 %v643, 32
    %v646 = vpop.permute.xlu0 %645
    %v648 = vadd.f32 %v638, %v646
    %v649 = vtanh.pop %v648
    %651 = vrot.lane.b32.xlu0 %v649, 64
    %v652 = vpop.permute.xlu0 %651
    %v654 = vmul.f32 %v636, %v652
    %656 = vrot.lane.b32.xlu0 %v654, 32
    %v657 = vpop.permute.xlu0 %656
    %659 = vst.msk [vmem:[#allocation3 + $0x8] sm:$0xff] %vm201, %v657
    %v660 = vld [vmem:[#allocation2 + $0x10] sm:$0xff]
    %v661 = vsel %vm201, %v657, 0
    %663 = vmatprep.subr.mxu0 0.0
    %664 = vmatpush1.msra.mxu0 %v449
    %665 = vmatprep.subr.mxu0 0.0
    %666 = vmatpush1.msra.mxu0 %v450
    %667 = vmatprep.subr.mxu0 0.0
    %668 = vmatpush1.msra.mxu0 %v451
    %669 = vmatprep.subr.mxu0 0.0
    %670 = vmatpush1.msra.mxu0 %v452
    %671 = vmatprep.subr.mxu0 0.0
    %672 = vmatpush1.msra.mxu0 0.0
    %673 = vmatprep.subr.mxu0 0.0
    %674 = vmatpush1.msra.mxu0 0.0
    %675 = vmatprep.subr.mxu0 0.0
    %676 = vmatpush1.msra.mxu0 0.0
    %677 = vmatprep.subr.mxu0 0.0
    %678 = vmatpush1.msra.mxu0 0.0
    %679 = vmatprep.subr.mxu0 0.0
    %680 = vmatpush1.msra.mxu0 0.0
    %681 = vmatprep.subr.mxu0 0.0
    %682 = vmatpush1.msra.mxu0 0.0
    %683 = vmatprep.subr.mxu0 0.0
    %684 = vmatpush1.msra.mxu0 0.0
    %685 = vmatprep.subr.mxu0 0.0
    %686 = vmatpush1.msra.mxu0 0.0
    %687 = vmatprep.subr.mxu0 0.0
    %688 = vmatpush1.msra.mxu0 0.0
    %689 = vmatprep.subr.mxu0 0.0
    %690 = vmatpush1.msra.mxu0 0.0
    %691 = vmatprep.subr.mxu0 0.0
    %692 = vmatpush1.msra.mxu0 0.0
    %693 = vmatprep.subr.mxu0 0.0
    %694 = vmatpush1.msra.mxu0 0.0
    %695 = vmatprep.subr.mxu0 0.0
    %696 = vmatpush1.msra.mxu0 0.0
    %697 = vmatprep.subr.mxu0 0.0
    %698 = vmatpush1.msra.mxu0 0.0
    %699 = vmatprep.subr.mxu0 0.0
    %700 = vmatpush1.msra.mxu0 0.0
    %701 = vmatprep.subr.mxu0 0.0
    %702 = vmatpush1.msra.mxu0 0.0
    %703 = vmatprep.subr.mxu0 0.0
    %704 = vmatpush1.msra.mxu0 0.0
    %705 = vmatprep.subr.mxu0 0.0
    %706 = vmatpush1.msra.mxu0 0.0
    %707 = vmatprep.subr.mxu0 0.0
    %708 = vmatpush1.msra.mxu0 0.0
    %709 = vmatprep.subr.mxu0 0.0
    %710 = vmatpush1.msra.mxu0 0.0
    %711 = vmatprep.subr.mxu0 0.0
    %712 = vmatpush1.msra.mxu0 0.0
    %713 = vmatprep.subr.mxu0 0.0
    %714 = vmatpush1.msra.mxu0 0.0
    %715 = vmatprep.subr.mxu0 0.0
    %716 = vmatpush1.msra.mxu0 0.0
    %717 = vmatprep.subr.mxu0 0.0
    %718 = vmatpush1.msra.mxu0 0.0
    %719 = vmatprep.subr.mxu0 0.0
    %720 = vmatpush1.msra.mxu0 0.0
    %721 = vmatprep.subr.mxu0 0.0
    %722 = vmatpush1.msra.mxu0 0.0
    %723 = vmatprep.subr.mxu0 0.0
    %724 = vmatpush1.msra.mxu0 0.0
    %725 = vmatprep.subr.mxu0 0.0
    %726 = vmatpush1.msra.mxu0 0.0
    %727 = vmatprep.mubr.f32.mxu0 0.0
    %728 = vmatmul.mubr.f32.gmra.mrb[0].mxu0 %v661
    %v729 = vpop.f32.mrb[0].mxu0
    %v730 = vadd.f32 0.0, %v729
    %v731 = vpop.f32.mrb[0].mxu0
    %732 = vdwg.mxu0
    %v733 = vadd.f32 %v660, %v730
    %v734 = vsub.f32 0.0, %v733
    %v735 = vmul.f32 %v734, 1.442695
    %v736 = vpow.pop %v735
    %v737 = vadd.f32 %v736, 1.0
    %v738 = vrcp.pop %v737
    %v739 = vmul.f32 1.0, %v738
    %v740 = vtanh.pop %v733
    %v741 = vmul.f32 %v739, %v648
    %743 = vrot.lane.b32.xlu0 %v740, 64
    %v744 = vpop.permute.xlu0 %743
    %v746 = vmul.f32 %v739, %v744
    %748 = vrot.lane.b32.xlu0 %v746, 32
    %v749 = vpop.permute.xlu0 %748
    %v751 = vadd.f32 %v741, %v749
    %v752 = vtanh.pop %v751
    %754 = vrot.lane.b32.xlu0 %v752, 64
    %v755 = vpop.permute.xlu0 %754
    %v757 = vmul.f32 %v739, %v755
    %759 = vrot.lane.b32.xlu0 %v757, 32
    %v760 = vpop.permute.xlu0 %759
    %762 = vst.msk [vmem:[#allocation3 + $0x10] sm:$0xff] %vm201, %v760
    %v763 = vld [vmem:[#allocation2 + $0x18] sm:$0xff]
    %v764 = vsel %vm201, %v760, 0
    %766 = vmatprep.subr.mxu0 0.0
    %767 = vmatpush1.msra.mxu0 %v449
    %768 = vmatprep.subr.mxu0 0.0
    %769 = vmatpush1.msra.mxu0 %v450
    %770 = vmatprep.subr.mxu0 0.0
    %771 = vmatpush1.msra.mxu0 %v451
    %772 = vmatprep.subr.mxu0 0.0
    %773 = vmatpush1.msra.mxu0 %v452
    %774 = vmatprep.subr.mxu0 0.0
    %775 = vmatpush1.msra.mxu0 0.0
    %776 = vmatprep.subr.mxu0 0.0
    %777 = vmatpush1.msra.mxu0 0.0
    %778 = vmatprep.subr.mxu0 0.0
    %779 = vmatpush1.msra.mxu0 0.0
    %780 = vmatprep.subr.mxu0 0.0
    %781 = vmatpush1.msra.mxu0 0.0
    %782 = vmatprep.subr.mxu0 0.0
    %783 = vmatpush1.msra.mxu0 0.0
    %784 = vmatprep.subr.mxu0 0.0
    %785 = vmatpush1.msra.mxu0 0.0
    %786 = vmatprep.subr.mxu0 0.0
    %787 = vmatpush1.msra.mxu0 0.0
    %788 = vmatprep.subr.mxu0 0.0
    %789 = vmatpush1.msra.mxu0 0.0
    %790 = vmatprep.subr.mxu0 0.0
    %791 = vmatpush1.msra.mxu0 0.0
    %792 = vmatprep.subr.mxu0 0.0
    %793 = vmatpush1.msra.mxu0 0.0
    %794 = vmatprep.subr.mxu0 0.0
    %795 = vmatpush1.msra.mxu0 0.0
    %796 = vmatprep.subr.mxu0 0.0
    %797 = vmatpush1.msra.mxu0 0.0
    %798 = vmatprep.subr.mxu0 0.0
    %799 = vmatpush1.msra.mxu0 0.0
    %800 = vmatprep.subr.mxu0 0.0
    %801 = vmatpush1.msra.mxu0 0.0
    %802 = vmatprep.subr.mxu0 0.0
    %803 = vmatpush1.msra.mxu0 0.0
    %804 = vmatprep.subr.mxu0 0.0
    %805 = vmatpush1.msra.mxu0 0.0
    %806 = vmatprep.subr.mxu0 0.0
    %807 = vmatpush1.msra.mxu0 0.0
    %808 = vmatprep.subr.mxu0 0.0
    %809 = vmatpush1.msra.mxu0 0.0
    %810 = vmatprep.subr.mxu0 0.0
    %811 = vmatpush1.msra.mxu0 0.0
    %812 = vmatprep.subr.mxu0 0.0
    %813 = vmatpush1.msra.mxu0 0.0
    %814 = vmatprep.subr.mxu0 0.0
    %815 = vmatpush1.msra.mxu0 0.0
    %816 = vmatprep.subr.mxu0 0.0
    %817 = vmatpush1.msra.mxu0 0.0
    %818 = vmatprep.subr.mxu0 0.0
    %819 = vmatpush1.msra.mxu0 0.0
    %820 = vmatprep.subr.mxu0 0.0
    %821 = vmatpush1.msra.mxu0 0.0
    %822 = vmatprep.subr.mxu0 0.0
    %823 = vmatpush1.msra.mxu0 0.0
    %824 = vmatprep.subr.mxu0 0.0
    %825 = vmatpush1.msra.mxu0 0.0
    %826 = vmatprep.subr.mxu0 0.0
    %827 = vmatpush1.msra.mxu0 0.0
    %828 = vmatprep.subr.mxu0 0.0
    %829 = vmatpush1.msra.mxu0 0.0
    %830 = vmatprep.mubr.f32.mxu0 0.0
    %831 = vmatmul.mubr.f32.gmra.mrb[0].mxu0 %v764
    %v832 = vpop.f32.mrb[0].mxu0
    %v833 = vadd.f32 0.0, %v832
    %v834 = vpop.f32.mrb[0].mxu0
    %835 = vdwg.mxu0
    %v836 = vadd.f32 %v763, %v833
    %v837 = vsub.f32 0.0, %v836
    %v838 = vmul.f32 %v837, 1.442695
    %v839 = vpow.pop %v838
    %v840 = vadd.f32 %v839, 1.0
    %v841 = vrcp.pop %v840
    %v842 = vmul.f32 1.0, %v841
    %v843 = vtanh.pop %v836
    %v844 = vmul.f32 %v842, %v751
    %846 = vrot.lane.b32.xlu0 %v843, 64
    %v847 = vpop.permute.xlu0 %846
    %v849 = vmul.f32 %v842, %v847
    %851 = vrot.lane.b32.xlu0 %v849, 32
    %v852 = vpop.permute.xlu0 %851
    %v854 = vadd.f32 %v844, %v852
    %v855 = vtanh.pop %v854
    %857 = vrot.lane.b32.xlu0 %v855, 64
    %v858 = vpop.permute.xlu0 %857
    %v860 = vmul.f32 %v842, %v858
    %862 = vrot.lane.b32.xlu0 %v860, 32
    %v863 = vpop.permute.xlu0 %862
    %865 = vst.msk [vmem:[#allocation3 + $0x18] sm:$0xff] %vm201, %v863
    %v866 = vld [vmem:[#allocation2 + $0x20] sm:$0xff]
    %v867 = vsel %vm201, %v863, 0
    %869 = vmatprep.subr.mxu0 0.0
    %870 = vmatpush1.msra.mxu0 %v449
    %871 = vmatprep.subr.mxu0 0.0
    %872 = vmatpush1.msra.mxu0 %v450
    %873 = vmatprep.subr.mxu0 0.0
    %874 = vmatpush1.msra.mxu0 %v451
    %875 = vmatprep.subr.mxu0 0.0
    %876 = vmatpush1.msra.mxu0 %v452
    %877 = vmatprep.subr.mxu0 0.0
    %878 = vmatpush1.msra.mxu0 0.0
    %879 = vmatprep.subr.mxu0 0.0
    %880 = vmatpush1.msra.mxu0 0.0
    %881 = vmatprep.subr.mxu0 0.0
    %882 = vmatpush1.msra.mxu0 0.0
    %883 = vmatprep.subr.mxu0 0.0
    %884 = vmatpush1.msra.mxu0 0.0
    %885 = vmatprep.subr.mxu0 0.0
    %886 = vmatpush1.msra.mxu0 0.0
    %887 = vmatprep.subr.mxu0 0.0
    %888 = vmatpush1.msra.mxu0 0.0
    %889 = vmatprep.subr.mxu0 0.0
    %890 = vmatpush1.msra.mxu0 0.0
    %891 = vmatprep.subr.mxu0 0.0
    %892 = vmatpush1.msra.mxu0 0.0
    %893 = vmatprep.subr.mxu0 0.0
    %894 = vmatpush1.msra.mxu0 0.0
    %895 = vmatprep.subr.mxu0 0.0
    %896 = vmatpush1.msra.mxu0 0.0
    %897 = vmatprep.subr.mxu0 0.0
    %898 = vmatpush1.msra.mxu0 0.0
    %899 = vmatprep.subr.mxu0 0.0
    %900 = vmatpush1.msra.mxu0 0.0
    %901 = vmatprep.subr.mxu0 0.0
    %902 = vmatpush1.msra.mxu0 0.0
    %903 = vmatprep.subr.mxu0 0.0
    %904 = vmatpush1.msra.mxu0 0.0
    %905 = vmatprep.subr.mxu0 0.0
    %906 = vmatpush1.msra.mxu0 0.0
    %907 = vmatprep.subr.mxu0 0.0
    %908 = vmatpush1.msra.mxu0 0.0
    %909 = vmatprep.subr.mxu0 0.0
    %910 = vmatpush1.msra.mxu0 0.0
    %911 = vmatprep.subr.mxu0 0.0
    %912 = vmatpush1.msra.mxu0 0.0
    %913 = vmatprep.subr.mxu0 0.0
    %914 = vmatpush1.msra.mxu0 0.0
    %915 = vmatprep.subr.mxu0 0.0
    %916 = vmatpush1.msra.mxu0 0.0
    %917 = vmatprep.subr.mxu0 0.0
    %918 = vmatpush1.msra.mxu0 0.0
    %919 = vmatprep.subr.mxu0 0.0
    %920 = vmatpush1.msra.mxu0 0.0
    %921 = vmatprep.subr.mxu0 0.0
    %922 = vmatpush1.msra.mxu0 0.0
    %923 = vmatprep.subr.mxu0 0.0
    %924 = vmatpush1.msra.mxu0 0.0
    %925 = vmatprep.subr.mxu0 0.0
    %926 = vmatpush1.msra.mxu0 0.0
    %927 = vmatprep.subr.mxu0 0.0
    %928 = vmatpush1.msra.mxu0 0.0
    %929 = vmatprep.subr.mxu0 0.0
    %930 = vmatpush1.msra.mxu0 0.0
    %931 = vmatprep.subr.mxu0 0.0
    %932 = vmatpush1.msra.mxu0 0.0
    %933 = vmatprep.mubr.f32.mxu0 0.0
    %934 = vmatmul.mubr.f32.gmra.mrb[0].mxu0 %v867
    %v935 = vpop.f32.mrb[0].mxu0
    %v936 = vadd.f32 0.0, %v935
    %v937 = vpop.f32.mrb[0].mxu0
    %938 = vdwg.mxu0
    %v939 = vadd.f32 %v866, %v936
    %v940 = vsub.f32 0.0, %v939
    %v941 = vmul.f32 %v940, 1.442695
    %v942 = vpow.pop %v941
    %v943 = vadd.f32 %v942, 1.0
    %v944 = vrcp.pop %v943
    %v945 = vmul.f32 1.0, %v944
    %v946 = vtanh.pop %v939
    %v947 = vmul.f32 %v945, %v854
    %949 = vrot.lane.b32.xlu0 %v946, 64
    %v950 = vpop.permute.xlu0 %949
    %v952 = vmul.f32 %v945, %v950
    %954 = vrot.lane.b32.xlu0 %v952, 32
    %v955 = vpop.permute.xlu0 %954
    %v957 = vadd.f32 %v947, %v955
    %v958 = vtanh.pop %v957
    %960 = vrot.lane.b32.xlu0 %v958, 64
    %v961 = vpop.permute.xlu0 %960
    %v963 = vmul.f32 %v945, %v961
    %965 = vrot.lane.b32.xlu0 %v963, 32
    %v966 = vpop.permute.xlu0 %965
    %968 = vst.msk [vmem:[#allocation3 + $0x20] sm:$0xff] %vm201, %v966
    %v969 = vld [vmem:[#allocation2 + $0x28] sm:$0xff]
    %v970 = vsel %vm201, %v966, 0
    %972 = vmatprep.subr.mxu0 0.0
    %973 = vmatpush1.msra.mxu0 %v449
    %974 = vmatprep.subr.mxu0 0.0
    %975 = vmatpush1.msra.mxu0 %v450
    %976 = vmatprep.subr.mxu0 0.0
    %977 = vmatpush1.msra.mxu0 %v451
    %978 = vmatprep.subr.mxu0 0.0
    %979 = vmatpush1.msra.mxu0 %v452
    %980 = vmatprep.subr.mxu0 0.0
    %981 = vmatpush1.msra.mxu0 0.0
    %982 = vmatprep.subr.mxu0 0.0
    %983 = vmatpush1.msra.mxu0 0.0
    %984 = vmatprep.subr.mxu0 0.0
    %985 = vmatpush1.msra.mxu0 0.0
    %986 = vmatprep.subr.mxu0 0.0
    %987 = vmatpush1.msra.mxu0 0.0
    %988 = vmatprep.subr.mxu0 0.0
    %989 = vmatpush1.msra.mxu0 0.0
    %990 = vmatprep.subr.mxu0 0.0
    %991 = vmatpush1.msra.mxu0 0.0
    %992 = vmatprep.subr.mxu0 0.0
    %993 = vmatpush1.msra.mxu0 0.0
    %994 = vmatprep.subr.mxu0 0.0
    %995 = vmatpush1.msra.mxu0 0.0
    %996 = vmatprep.subr.mxu0 0.0
    %997 = vmatpush1.msra.mxu0 0.0
    %998 = vmatprep.subr.mxu0 0.0
    %999 = vmatpush1.msra.mxu0 0.0
    %1000 = vmatprep.subr.mxu0 0.0
    %1001 = vmatpush1.msra.mxu0 0.0
    %1002 = vmatprep.subr.mxu0 0.0
    %1003 = vmatpush1.msra.mxu0 0.0
    %1004 = vmatprep.subr.mxu0 0.0
    %1005 = vmatpush1.msra.mxu0 0.0
    %1006 = vmatprep.subr.mxu0 0.0
    %1007 = vmatpush1.msra.mxu0 0.0
    %1008 = vmatprep.subr.mxu0 0.0
    %1009 = vmatpush1.msra.mxu0 0.0
    %1010 = vmatprep.subr.mxu0 0.0
    %1011 = vmatpush1.msra.mxu0 0.0
    %1012 = vmatprep.subr.mxu0 0.0
    %1013 = vmatpush1.msra.mxu0 0.0
    %1014 = vmatprep.subr.mxu0 0.0
    %1015 = vmatpush1.msra.mxu0 0.0
    %1016 = vmatprep.subr.mxu0 0.0
    %1017 = vmatpush1.msra.mxu0 0.0
    %1018 = vmatprep.subr.mxu0 0.0
    %1019 = vmatpush1.msra.mxu0 0.0
    %1020 = vmatprep.subr.mxu0 0.0
    %1021 = vmatpush1.msra.mxu0 0.0
    %1022 = vmatprep.subr.mxu0 0.0
    %1023 = vmatpush1.msra.mxu0 0.0
    %1024 = vmatprep.subr.mxu0 0.0
    %1025 = vmatpush1.msra.mxu0 0.0
    %1026 = vmatprep.subr.mxu0 0.0
    %1027 = vmatpush1.msra.mxu0 0.0
    %1028 = vmatprep.subr.mxu0 0.0
    %1029 = vmatpush1.msra.mxu0 0.0
    %1030 = vmatprep.subr.mxu0 0.0
    %1031 = vmatpush1.msra.mxu0 0.0
    %1032 = vmatprep.subr.mxu0 0.0
    %1033 = vmatpush1.msra.mxu0 0.0
    %1034 = vmatprep.subr.mxu0 0.0
    %1035 = vmatpush1.msra.mxu0 0.0
    %1036 = vmatprep.mubr.f32.mxu0 0.0
    %1037 = vmatmul.mubr.f32.gmra.mrb[0].mxu0 %v970
    %v1038 = vpop.f32.mrb[0].mxu0
    %v1039 = vadd.f32 0.0, %v1038
    %v1040 = vpop.f32.mrb[0].mxu0
    %1041 = vdwg.mxu0
    %v1042 = vadd.f32 %v969, %v1039
    %v1043 = vsub.f32 0.0, %v1042
    %v1044 = vmul.f32 %v1043, 1.442695
    %v1045 = vpow.pop %v1044
    %v1046 = vadd.f32 %v1045, 1.0
    %v1047 = vrcp.pop %v1046
    %v1048 = vmul.f32 1.0, %v1047
    %v1049 = vtanh.pop %v1042
    %v1050 = vmul.f32 %v1048, %v957
    %1052 = vrot.lane.b32.xlu0 %v1049, 64
    %v1053 = vpop.permute.xlu0 %1052
    %v1055 = vmul.f32 %v1048, %v1053
    %1057 = vrot.lane.b32.xlu0 %v1055, 32
    %v1058 = vpop.permute.xlu0 %1057
    %v1060 = vadd.f32 %v1050, %v1058
    %v1061 = vtanh.pop %v1060
    %1063 = vrot.lane.b32.xlu0 %v1061, 64
    %v1064 = vpop.permute.xlu0 %1063
    %v1066 = vmul.f32 %v1048, %v1064
    %1068 = vrot.lane.b32.xlu0 %v1066, 32
    %v1069 = vpop.permute.xlu0 %1068
    %1071 = vst.msk [vmem:[#allocation3 + $0x28] sm:$0xff] %vm201, %v1069
    %v1072 = vld [vmem:[#allocation2 + $0x30] sm:$0xff]
    %v1073 = vsel %vm201, %v1069, 0
    %1075 = vmatprep.subr.mxu0 0.0
    %1076 = vmatpush1.msra.mxu0 %v449
    %1077 = vmatprep.subr.mxu0 0.0
    %1078 = vmatpush1.msra.mxu0 %v450
    %1079 = vmatprep.subr.mxu0 0.0
    %1080 = vmatpush1.msra.mxu0 %v451
    %1081 = vmatprep.subr.mxu0 0.0
    %1082 = vmatpush1.msra.mxu0 %v452
    %1083 = vmatprep.subr.mxu0 0.0
    %1084 = vmatpush1.msra.mxu0 0.0
    %1085 = vmatprep.subr.mxu0 0.0
    %1086 = vmatpush1.msra.mxu0 0.0
    %1087 = vmatprep.subr.mxu0 0.0
    %1088 = vmatpush1.msra.mxu0 0.0
    %1089 = vmatprep.subr.mxu0 0.0
    %1090 = vmatpush1.msra.mxu0 0.0
    %1091 = vmatprep.subr.mxu0 0.0
    %1092 = vmatpush1.msra.mxu0 0.0
    %1093 = vmatprep.subr.mxu0 0.0
    %1094 = vmatpush1.msra.mxu0 0.0
    %1095 = vmatprep.subr.mxu0 0.0
    %1096 = vmatpush1.msra.mxu0 0.0
    %1097 = vmatprep.subr.mxu0 0.0
    %1098 = vmatpush1.msra.mxu0 0.0
    %1099 = vmatprep.subr.mxu0 0.0
    %1100 = vmatpush1.msra.mxu0 0.0
    %1101 = vmatprep.subr.mxu0 0.0
    %1102 = vmatpush1.msra.mxu0 0.0
    %1103 = vmatprep.subr.mxu0 0.0
    %1104 = vmatpush1.msra.mxu0 0.0
    %1105 = vmatprep.subr.mxu0 0.0
    %1106 = vmatpush1.msra.mxu0 0.0
    %1107 = vmatprep.subr.mxu0 0.0
    %1108 = vmatpush1.msra.mxu0 0.0
    %1109 = vmatprep.subr.mxu0 0.0
    %1110 = vmatpush1.msra.mxu0 0.0
    %1111 = vmatprep.subr.mxu0 0.0
    %1112 = vmatpush1.msra.mxu0 0.0
    %1113 = vmatprep.subr.mxu0 0.0
    %1114 = vmatpush1.msra.mxu0 0.0
    %1115 = vmatprep.subr.mxu0 0.0
    %1116 = vmatpush1.msra.mxu0 0.0
    %1117 = vmatprep.subr.mxu0 0.0
    %1118 = vmatpush1.msra.mxu0 0.0
    %1119 = vmatprep.subr.mxu0 0.0
    %1120 = vmatpush1.msra.mxu0 0.0
    %1121 = vmatprep.subr.mxu0 0.0
    %1122 = vmatpush1.msra.mxu0 0.0
    %1123 = vmatprep.subr.mxu0 0.0
    %1124 = vmatpush1.msra.mxu0 0.0
    %1125 = vmatprep.subr.mxu0 0.0
    %1126 = vmatpush1.msra.mxu0 0.0
    %1127 = vmatprep.subr.mxu0 0.0
    %1128 = vmatpush1.msra.mxu0 0.0
    %1129 = vmatprep.subr.mxu0 0.0
    %1130 = vmatpush1.msra.mxu0 0.0
    %1131 = vmatprep.subr.mxu0 0.0
    %1132 = vmatpush1.msra.mxu0 0.0
    %1133 = vmatprep.subr.mxu0 0.0
    %1134 = vmatpush1.msra.mxu0 0.0
    %1135 = vmatprep.subr.mxu0 0.0
    %1136 = vmatpush1.msra.mxu0 0.0
    %1137 = vmatprep.subr.mxu0 0.0
    %1138 = vmatpush1.msra.mxu0 0.0
    %1139 = vmatprep.mubr.f32.mxu0 0.0
    %1140 = vmatmul.mubr.f32.gmra.mrb[0].mxu0 %v1073
    %v1141 = vpop.f32.mrb[0].mxu0
    %v1142 = vadd.f32 0.0, %v1141
    %v1143 = vpop.f32.mrb[0].mxu0
    %1144 = vdwg.mxu0
    %v1145 = vadd.f32 %v1072, %v1142
    %v1146 = vsub.f32 0.0, %v1145
    %v1147 = vmul.f32 %v1146, 1.442695
    %v1148 = vpow.pop %v1147
    %v1149 = vadd.f32 %v1148, 1.0
    %v1150 = vrcp.pop %v1149
    %v1151 = vmul.f32 1.0, %v1150
    %v1152 = vtanh.pop %v1145
    %v1153 = vmul.f32 %v1151, %v1060
    %1155 = vrot.lane.b32.xlu0 %v1152, 64
    %v1156 = vpop.permute.xlu0 %1155
    %v1158 = vmul.f32 %v1151, %v1156
    %1160 = vrot.lane.b32.xlu0 %v1158, 32
    %v1161 = vpop.permute.xlu0 %1160
    %v1163 = vadd.f32 %v1153, %v1161
    %v1164 = vtanh.pop %v1163
    %1166 = vrot.lane.b32.xlu0 %v1164, 64
    %v1167 = vpop.permute.xlu0 %1166
    %v1169 = vmul.f32 %v1151, %v1167
    %1171 = vrot.lane.b32.xlu0 %v1169, 32
    %v1172 = vpop.permute.xlu0 %1171
    %1174 = vst.msk [vmem:[#allocation3 + $0x30] sm:$0xff] %vm201, %v1172
    %v1175 = vld [vmem:[#allocation2 + $0x38] sm:$0xff]
    %v1176 = vsel %vm201, %v1172, 0
    %1178 = vmatprep.subr.mxu0 0.0
    %1179 = vmatpush1.msra.mxu0 %v449
    %1180 = vmatprep.subr.mxu0 0.0
    %1181 = vmatpush1.msra.mxu0 %v450
    %1182 = vmatprep.subr.mxu0 0.0
    %1183 = vmatpush1.msra.mxu0 %v451
    %1184 = vmatprep.subr.mxu0 0.0
    %1185 = vmatpush1.msra.mxu0 %v452
    %1186 = vmatprep.subr.mxu0 0.0
    %1187 = vmatpush1.msra.mxu0 0.0
    %1188 = vmatprep.subr.mxu0 0.0
    %1189 = vmatpush1.msra.mxu0 0.0
    %1190 = vmatprep.subr.mxu0 0.0
    %1191 = vmatpush1.msra.mxu0 0.0
    %1192 = vmatprep.subr.mxu0 0.0
    %1193 = vmatpush1.msra.mxu0 0.0
    %1194 = vmatprep.subr.mxu0 0.0
    %1195 = vmatpush1.msra.mxu0 0.0
    %1196 = vmatprep.subr.mxu0 0.0
    %1197 = vmatpush1.msra.mxu0 0.0
    %1198 = vmatprep.subr.mxu0 0.0
    %1199 = vmatpush1.msra.mxu0 0.0
    %1200 = vmatprep.subr.mxu0 0.0
    %1201 = vmatpush1.msra.mxu0 0.0
    %1202 = vmatprep.subr.mxu0 0.0
    %1203 = vmatpush1.msra.mxu0 0.0
    %1204 = vmatprep.subr.mxu0 0.0
    %1205 = vmatpush1.msra.mxu0 0.0
    %1206 = vmatprep.subr.mxu0 0.0
    %1207 = vmatpush1.msra.mxu0 0.0
    %1208 = vmatprep.subr.mxu0 0.0
    %1209 = vmatpush1.msra.mxu0 0.0
    %1210 = vmatprep.subr.mxu0 0.0
    %1211 = vmatpush1.msra.mxu0 0.0
    %1212 = vmatprep.subr.mxu0 0.0
    %1213 = vmatpush1.msra.mxu0 0.0
    %1214 = vmatprep.subr.mxu0 0.0
    %1215 = vmatpush1.msra.mxu0 0.0
    %1216 = vmatprep.subr.mxu0 0.0
    %1217 = vmatpush1.msra.mxu0 0.0
    %1218 = vmatprep.subr.mxu0 0.0
    %1219 = vmatpush1.msra.mxu0 0.0
    %1220 = vmatprep.subr.mxu0 0.0
    %1221 = vmatpush1.msra.mxu0 0.0
    %1222 = vmatprep.subr.mxu0 0.0
    %1223 = vmatpush1.msra.mxu0 0.0
    %1224 = vmatprep.subr.mxu0 0.0
    %1225 = vmatpush1.msra.mxu0 0.0
    %1226 = vmatprep.subr.mxu0 0.0
    %1227 = vmatpush1.msra.mxu0 0.0
    %1228 = vmatprep.subr.mxu0 0.0
    %1229 = vmatpush1.msra.mxu0 0.0
    %1230 = vmatprep.subr.mxu0 0.0
    %1231 = vmatpush1.msra.mxu0 0.0
    %1232 = vmatprep.subr.mxu0 0.0
    %1233 = vmatpush1.msra.mxu0 0.0
    %1234 = vmatprep.subr.mxu0 0.0
    %1235 = vmatpush1.msra.mxu0 0.0
    %1236 = vmatprep.subr.mxu0 0.0
    %1237 = vmatpush1.msra.mxu0 0.0
    %1238 = vmatprep.subr.mxu0 0.0
    %1239 = vmatpush1.msra.mxu0 0.0
    %1240 = vmatprep.subr.mxu0 0.0
    %1241 = vmatpush1.msra.mxu0 0.0
    %1242 = vmatprep.mubr.f32.mxu0 0.0
    %1243 = vmatmul.mubr.f32.gmra.mrb[0].mxu0 %v1176
    %v1244 = vpop.f32.mrb[0].mxu0
    %v1245 = vadd.f32 0.0, %v1244
    %v1246 = vpop.f32.mrb[0].mxu0
    %1247 = vdwg.mxu0
    %v1248 = vadd.f32 %v1175, %v1245
    %v1249 = vsub.f32 0.0, %v1248
    %v1250 = vmul.f32 %v1249, 1.442695
    %v1251 = vpow.pop %v1250
    %v1252 = vadd.f32 %v1251, 1.0
    %v1253 = vrcp.pop %v1252
    %v1254 = vmul.f32 1.0, %v1253
    %v1255 = vtanh.pop %v1248
    %v1256 = vmul.f32 %v1254, %v1163
    %1258 = vrot.lane.b32.xlu0 %v1255, 64
    %v1259 = vpop.permute.xlu0 %1258
    %v1261 = vmul.f32 %v1254, %v1259
    %1263 = vrot.lane.b32.xlu0 %v1261, 32
    %v1264 = vpop.permute.xlu0 %1263
    %v1266 = vadd.f32 %v1256, %v1264
    %v1267 = vtanh.pop %v1266
    %1269 = vrot.lane.b32.xlu0 %v1267, 64
    %v1270 = vpop.permute.xlu0 %1269
    %v1272 = vmul.f32 %v1254, %v1270
    %1274 = vrot.lane.b32.xlu0 %v1272, 32
    %v1275 = vpop.permute.xlu0 %1274
    %1277 = vst.msk [vmem:[#allocation3 + $0x38] sm:$0xff] %vm201, %v1275
    %v1278 = vld [vmem:[#allocation3] sm:$0xff]
    %v1279 = vld [vmem:[#allocation3 + $0x8] sm:$0xff]
    %v1280 = vld [vmem:[#allocation3 + $0x10] sm:$0xff]
    %v1281 = vld [vmem:[#allocation3 + $0x18] sm:$0xff]
    %v1282 = vld [vmem:[#allocation3 + $0x20] sm:$0xff]
    %v1283 = vld [vmem:[#allocation3 + $0x28] sm:$0xff]
    %v1284 = vld [vmem:[#allocation3 + $0x30] sm:$0xff]
    %v1285 = vld [vmem:[#allocation3 + $0x38] sm:$0xff]
    %v1286 = vpack.c.bf16 %v1279, %v1278
    %v1287 = vpack.c.bf16 %v1281, %v1280
    %v1288 = vpack.c.bf16 %v1283, %v1282
    %v1289 = vpack.c.bf16 %v1285, %v1284
    %v1290 = vld [vmem:[%s8] sm:$0xf]
    %v1291 = vld [vmem:[%s8 + $0x4] sm:$0xf]
    %v1292 = vld [vmem:[%s8 + $0x8] sm:$0xf]
    %v1293 = vld [vmem:[%s8 + $0xc] sm:$0xf]
    %v1294 = vld [vmem:[%s9] sm:$0x1]
    %v1296 = vlaneseq
    %v1297 = vshrl.u32 %v1296, 7
    %v1298 = vsub.s32 0, %v1297
    %v1299 = vrot.slane %v1294, %v1298
    %v1305 = vunpack.c.l.b16 %v1290
    %v1306 = vunpack.c.l.b16 %v1291
    %v1307 = vunpack.c.l.b16 %v1292
    %v1308 = vunpack.c.l.b16 %v1293
    %v1309 = vpack.c.b16 %v1306, %v1305
    %v1310 = vpack.c.b16 %v1308, %v1307
    %v1314 = vsel %vm201, %v1286, 0
    %v1317 = vsel %vm201, %v1287, 0
    %v1320 = vsel %vm201, %v1288, 0
    %v1323 = vsel %vm201, %v1289, 0
    %1325 = vmatprep.subr.bf16.mxu0 0
    %1326 = vmatpush1.bf16.msra.mxu0 %v1309
    %1327 = vmatprep.subr.bf16.mxu0 0
    %1328 = vmatpush1.bf16.msra.mxu0 %v1310
    %1329 = vmatprep.subr.bf16.mxu0 0
    %1330 = vmatpush1.bf16.msra.mxu0 0
    %1331 = vmatprep.subr.bf16.mxu0 0
    %1332 = vmatpush1.bf16.msra.mxu0 0
    %1333 = vmatprep.subr.bf16.mxu0 0
    %1334 = vmatpush1.bf16.msra.mxu0 0
    %1335 = vmatprep.subr.bf16.mxu0 0
    %1336 = vmatpush1.bf16.msra.mxu0 0
    %1337 = vmatprep.subr.bf16.mxu0 0
    %1338 = vmatpush1.bf16.msra.mxu0 0
    %1339 = vmatprep.subr.bf16.mxu0 0
    %1340 = vmatpush1.bf16.msra.mxu0 0
    %1341 = vmatprep.subr.bf16.mxu0 0
    %1342 = vmatpush1.bf16.msra.mxu0 0
    %1343 = vmatprep.subr.bf16.mxu0 0
    %1344 = vmatpush1.bf16.msra.mxu0 0
    %1345 = vmatprep.subr.bf16.mxu0 0
    %1346 = vmatpush1.bf16.msra.mxu0 0
    %1347 = vmatprep.subr.bf16.mxu0 0
    %1348 = vmatpush1.bf16.msra.mxu0 0
    %1349 = vmatprep.subr.bf16.mxu0 0
    %1350 = vmatpush1.bf16.msra.mxu0 0
    %1351 = vmatprep.subr.bf16.mxu0 0
    %1352 = vmatpush1.bf16.msra.mxu0 0
    %1353 = vmatprep.subr.bf16.mxu0 0
    %1354 = vmatpush1.bf16.msra.mxu0 0
    %1355 = vmatprep.subr.bf16.mxu0 0
    %1356 = vmatpush1.bf16.msra.mxu0 0
    %1357 = vmatprep.mubr.bf16.mxu0 0
    %1358 = vmatmul.mubr.bf16.gmra.mrb[0].mxu0 %v1314
    %v1359 = vpop.f32.mrb[0].mxu0
    %v1360 = vadd.f32 %v1299, %v1359
    %v1361 = vpop.f32.mrb[0].mxu0
    %v1362 = vpop.f32.mrb[0].mxu0
    %v1363 = vadd.f32 %v1299, %v1362
    %v1364 = vpop.f32.mrb[0].mxu0
    %1365 = vmatprep.mubr.bf16.mxu0 0
    %1366 = vmatmul.mubr.bf16.gmra.mrb[0].mxu0 %v1317
    %v1367 = vpop.f32.mrb[0].mxu0
    %v1368 = vadd.f32 %v1299, %v1367
    %v1369 = vpop.f32.mrb[0].mxu0
    %v1370 = vpop.f32.mrb[0].mxu0
    %v1371 = vadd.f32 %v1299, %v1370
    %v1372 = vpop.f32.mrb[0].mxu0
    %1373 = vmatprep.mubr.bf16.mxu0 0
    %1374 = vmatmul.mubr.bf16.gmra.mrb[0].mxu0 %v1320
    %v1375 = vpop.f32.mrb[0].mxu0
    %v1376 = vadd.f32 %v1299, %v1375
    %v1377 = vpop.f32.mrb[0].mxu0
    %v1378 = vpop.f32.mrb[0].mxu0
    %v1379 = vadd.f32 %v1299, %v1378
    %v1380 = vpop.f32.mrb[0].mxu0
    %1381 = vmatprep.mubr.bf16.mxu0 0
    %1382 = vmatmul.mubr.bf16.gmra.mrb[0].mxu0 %v1323
    %v1383 = vpop.f32.mrb[0].mxu0
    %v1384 = vadd.f32 %v1299, %v1383
    %v1385 = vpop.f32.mrb[0].mxu0
    %v1386 = vpop.f32.mrb[0].mxu0
    %v1387 = vadd.f32 %v1299, %v1386
    %v1388 = vpop.f32.mrb[0].mxu0
    %1389 = vdwg.mxu0
    %v1390 = vmax.f32 %v1360, 0.0
    %v1391 = vmax.f32 %v1363, 0.0
    %v1392 = vmax.f32 %v1368, 0.0
    %v1393 = vmax.f32 %v1371, 0.0
    %v1394 = vmax.f32 %v1376, 0.0
    %v1395 = vmax.f32 %v1379, 0.0
    %v1396 = vmax.f32 %v1384, 0.0
    %v1397 = vmax.f32 %v1387, 0.0
    %v1398 = vld [vmem:[%s10] sm:$0x1]
    %v1400 = vsel %vm201, %v1398, 0
    %v1403 = vsel %vm201, %v1390, 0
    %v1406 = vsel %vm201, %v1391, 0
    %v1409 = vsel %vm201, %v1392, 0
    %v1412 = vsel %vm201, %v1393, 0
    %v1415 = vsel %vm201, %v1394, 0
    %v1418 = vsel %vm201, %v1395, 0
    %v1421 = vsel %vm201, %v1396, 0
    %v1424 = vsel %vm201, %v1397, 0
    %1426 = vmatprep.subr.mxu0 0.0
    %1427 = vmatpush1.xpose.msra.mxu0 %v1403
    %1428 = vmatprep.subr.mxu0 0.0
    %1429 = vmatpush1.xpose.msra.mxu0 %v1406
    %1430 = vmatprep.subr.mxu0 0.0
    %1431 = vmatpush1.xpose.msra.mxu0 %v1409
    %1432 = vmatprep.subr.mxu0 0.0
    %1433 = vmatpush1.xpose.msra.mxu0 %v1412
    %1434 = vmatprep.subr.mxu0 0.0
    %1435 = vmatpush1.xpose.msra.mxu0 %v1415
    %1436 = vmatprep.subr.mxu0 0.0
    %1437 = vmatpush1.xpose.msra.mxu0 %v1418
    %1438 = vmatprep.subr.mxu0 0.0
    %1439 = vmatpush1.xpose.msra.mxu0 %v1421
    %1440 = vmatprep.subr.mxu0 0.0
    %1441 = vmatpush1.xpose.msra.mxu0 %v1424
    %1442 = vmatprep.subr.mxu0 0.0
    %1443 = vmatpush1.xpose.msra.mxu0 0.0
    %1444 = vmatprep.subr.mxu0 0.0
    %1445 = vmatpush1.xpose.msra.mxu0 0.0
    %1446 = vmatprep.subr.mxu0 0.0
    %1447 = vmatpush1.xpose.msra.mxu0 0.0
    %1448 = vmatprep.subr.mxu0 0.0
    %1449 = vmatpush1.xpose.msra.mxu0 0.0
    %1450 = vmatprep.subr.mxu0 0.0
    %1451 = vmatpush1.xpose.msra.mxu0 0.0
    %1452 = vmatprep.subr.mxu0 0.0
    %1453 = vmatpush1.xpose.msra.mxu0 0.0
    %1454 = vmatprep.subr.mxu0 0.0
    %1455 = vmatpush1.xpose.msra.mxu0 0.0
    %1456 = vmatprep.subr.mxu0 0.0
    %1457 = vmatpush1.xpose.msra.mxu0 0.0
    %1458 = vmatprep.subr.mxu0 0.0
    %1459 = vmatpush1.xpose.msra.mxu0 0.0
    %1460 = vmatprep.subr.mxu0 0.0
    %1461 = vmatpush1.xpose.msra.mxu0 0.0
    %1462 = vmatprep.subr.mxu0 0.0
    %1463 = vmatpush1.xpose.msra.mxu0 0.0
    %1464 = vmatprep.subr.mxu0 0.0
    %1465 = vmatpush1.xpose.msra.mxu0 0.0
    %1466 = vmatprep.subr.mxu0 0.0
    %1467 = vmatpush1.xpose.msra.mxu0 0.0
    %1468 = vmatprep.subr.mxu0 0.0
    %1469 = vmatpush1.xpose.msra.mxu0 0.0
    %1470 = vmatprep.subr.mxu0 0.0
    %1471 = vmatpush1.xpose.msra.mxu0 0.0
    %1472 = vmatprep.subr.mxu0 0.0
    %1473 = vmatpush1.xpose.msra.mxu0 0.0
    %1474 = vmatprep.subr.mxu0 0.0
    %1475 = vmatpush1.xpose.msra.mxu0 0.0
    %1476 = vmatprep.subr.mxu0 0.0
    %1477 = vmatpush1.xpose.msra.mxu0 0.0
    %1478 = vmatprep.subr.mxu0 0.0
    %1479 = vmatpush1.xpose.msra.mxu0 0.0
    %1480 = vmatprep.subr.mxu0 0.0
    %1481 = vmatpush1.xpose.msra.mxu0 0.0
    %1482 = vmatprep.subr.mxu0 0.0
    %1483 = vmatpush1.xpose.msra.mxu0 0.0
    %1484 = vmatprep.subr.mxu0 0.0
    %1485 = vmatpush1.xpose.msra.mxu0 0.0
    %1486 = vmatprep.subr.mxu0 0.0
    %1487 = vmatpush1.xpose.msra.mxu0 0.0
    %1488 = vmatprep.subr.mxu0 0.0
    %1489 = vmatpush1.xpose.msra.mxu0 0.0
    %1490 = vmatprep.mubr.f32.mxu0 0.0
    %1491 = vmatmul.mubr.f32.gmra.mrb[0].mxu0 %v1400
    %v1492 = vpop.f32.mrb[0].mxu0
    %v1493 = vadd.f32 0.0, %v1492
    %v1494 = vpop.f32.mrb[0].mxu0
    %1495 = vdwg.mxu0
    %vm1496 = vcmask 516096
    %1497 = vst.msk [vmem:[#allocation10] sm:$0x1] %vm1496, %v1493
    // Predicated region
    $region58: #{tpu_custom_call.1} parent=1 // pred_check
      _
    $region59: #{tpu_custom_call.1} parent=1 // pred_check_branch
      %1499 = sbr.rel (0) target = $region61
    $region60: #{tpu_custom_call.1} parent=1 // pred_region
      %s1501 = ssub.s32 16, 16
      %1502 = vsyncadd [#allocation6], %s1501
      %s1504 = sshll.u32 [#allocation10], 4
      %s1505 = int_to_ptr.vmem [resolvable:$true] %s1504
      %1507 = dma.vmem_to_hbm [thread:$0]  %s1505, 16, %s11, [#allocation6]
    $region61: #{tpu_custom_call.1} parent=1 // pred_fallthru
      _
    // Predicated region
    $region62: #{tpu_custom_call.1} parent=1 // pred_check
      _
    $region63: #{tpu_custom_call.1} parent=1 // pred_check_branch
      %1509 = sbr.rel (0) target = $region65
    $region64: #{tpu_custom_call.1} parent=1 // pred_region
      %1510 = dma.done [#allocation6], 16
    $region65: #{tpu_custom_call.1} parent=1 // pred_fallthru
      _
    %1511 = vsyncpa [#allocation5], 1
    %1512 = vsyncpa [#allocation8], 1
    %1513 = vsyncpa [#allocation6], 1

</llo_original>
